<compile_context>
chip_gen: v5e
topology: v5e:2x2
jax: 0.10.0
libtpu: 0.0.40
codegen_flags: <defaults>
</compile_context>

<pallas_src>
import functools
import math

import numpy as np
import jax
import jax.numpy as jnp
from jax import lax
from jax.experimental import pallas as pl
from jax.experimental.pallas import tpu as pltpu


def _axial_block_kernel(x_ref, pos_ref, w_ref, vec_ref, bias_ref, o_ref, *,
                        strip, n_strips):
    """One batch sample per program; activations channel-major (C, W*H)."""
    C = vec_ref.shape[0]

    x = x_ref[0]                       # (C, WH)  lane dim = W*H (lane-dense)
    w = w_ref[...]                     # (6C, C)  [wq; wk; wv; wo; wd; gmat]
    vec = vec_ref[...]                 # (C, 9)   per-channel vectors (columns)
    bias = bias_ref[...]               # (strip, strip) additive column mask

    wqkv = w[0:3 * C]                  # fused in-projection (3C, C)
    wo = w[3 * C:4 * C]
    wd = w[4 * C:5 * C]
    gmat = w[5 * C:6 * C]              # same-group indicator / (W*H * C/G)

    gn1_w = vec[:, 0:1]
    gn1_b = vec[:, 1:2]
    gn2_w = vec[:, 2:3]
    gn2_b = vec[:, 3:4]
    bq = vec[:, 4:5]
    bk = vec[:, 5:6]
    bv = vec[:, 6:7]
    bo = vec[:, 7:8]
    bd = vec[:, 8:9]

    def group_norm(h, gamma, beta):
        # torch GroupNorm: per-(sample, group) stats over all spatial positions
        # and the channels in that group; biased variance; centered two-pass.
        # NOTE(review, low-prio): the tiny gmat dots (reduce + broadcast over
        # groups in one (C,C)@(C,1) push) are kept; they are off the critical
        # path and simpler than a sublane segment-sum.
        ch_sum = jnp.sum(h, axis=1, keepdims=True)                       # (C,1)
        mean_c = jnp.dot(gmat, ch_sum, preferred_element_type=jnp.float32)
        d = h - mean_c
        ch_ss = jnp.sum(d * d, axis=1, keepdims=True)                    # (C,1)
        var_c = jnp.dot(gmat, ch_ss, preferred_element_type=jnp.float32)
        inv = lax.rsqrt(var_c + 1e-5)
        return d * (inv * gamma) + beta

    # 1) axial position embedding (pre-spread over the w-major flat axis)
    h = x + pos_ref[...]

    # 2) GroupNorm #1
    h = group_norm(h, gn1_w, gn1_b)

    # 3) single-head self-attention along H.  With the w-major flattening the
    #    interacting (query, key) pairs live inside aligned `strip`-wide lane
    #    blocks, so scores are computed block-diagonally per strip:
    #    (strip, strip) instead of (HW, HW), with the softmax fused per strip
    #    (strip-wise fusion feedback; static loop == fully unrolled).
    qkv = jnp.dot(wqkv, h, preferred_element_type=jnp.float32)          # (3C, WH)
    scale = 1.0 / math.sqrt(C)
    # bf16 MXU operands (feedback); accumulation and softmax stay f32.
    q = ((qkv[0:C] + bq) * scale).astype(jnp.bfloat16)
    k = (qkv[C:2 * C] + bk).astype(jnp.bfloat16)
    v = (qkv[2 * C:3 * C] + bv).astype(jnp.bfloat16)

    ctx_parts = []
    for r in range(n_strips):                         # static, few iterations
        sl = slice(r * strip, (r + 1) * strip)
        q_s = q[:, sl]                                # (C, strip)
        k_s = k[:, sl]
        v_s = v[:, sl]
        # lane-dense score matmul, no q.T materialization (feedback)
        s = lax.dot_general(q_s, k_s, (((0,), (0,)), ((), ())),
                            preferred_element_type=jnp.float32)  # (strip, strip)
        s = s + bias                                  # precomputed additive mask
        m = jnp.max(s, axis=-1, keepdims=True)
        p = jnp.exp(s - m)                            # masked entries -> exactly 0
        denom = jnp.sum(p, axis=-1, keepdims=True)
        inv = pl.reciprocal(denom, approx=True)       # EUP slot
        inv = inv * (2.0 - denom * inv)               # one Newton step (review concern)
        attn = (p * inv).astype(jnp.bfloat16)
        # TODO(synk): nn.MultiheadAttention dropout(p=0.1) omitted — eval-mode identity.
        # context kept channel-major, no (HW, C) intermediate (feedback)
        ctx_parts.append(
            lax.dot_general(v_s, attn, (((1,), (1,)), ((), ())),
                            preferred_element_type=jnp.float32))  # (C, strip)
    ctx = ctx_parts[0] if n_strips == 1 else jnp.concatenate(ctx_parts, axis=1)

    h = jnp.dot(wo, ctx, preferred_element_type=jnp.float32) + bo       # (C, WH)

    # 4) GroupNorm #2
    h = group_norm(h, gn2_w, gn2_b)

    # 5) Dense (per-position Linear over channels)
    h = jnp.dot(wd, h, preferred_element_type=jnp.float32) + bd

    # 6) CombineResidualWithSkip(project_skip=False): (h + x) / sqrt(2)
    o_ref[0] = (h + x) * (1.0 / math.sqrt(2.0))


def _num_groups(c):
    # torch: nn.GroupNorm(min(max(C // 4, 1), 32), C)
    return min(max(c // 4, 1), 32)


def _strip_config(h, w):
    """Largest lane strip <= 128 that is a whole number of attention columns."""
    max_cols = max(1, 128 // h)
    cols = 1
    for d in range(min(w, max_cols), 0, -1):
        if w % d == 0:
            cols = d
            break
    return cols * h, w // cols            # (strip, n_strips)


@jax.jit
def axial_self_attention_block(x_nchw, params):
    """x_nchw: (B, C, H, W) float32 -> (B, C, H, W) float32."""
    B, C, H, W = x_nchw.shape
    G = _num_groups(C)
    assert C % G == 0, "torch GroupNorm requires in_channels % num_groups == 0"
    WH = W * H
    Cg = C // G
    strip, n_strips = _strip_config(H, W)

    # ---- trace-time packing (wrapper-side layout plumbing) -------------------
    # w-major spatial flattening: flat index = w*H + h, so each attention
    # column (fixed w) is a contiguous lane range (block-diagonal scores).
    x2 = jnp.transpose(x_nchw, (0, 1, 3, 2)).reshape(B, C, WH)
    # axial pos-emb (H, C) -> channel-major, spread over the w*H + h flattening
    pos_flat = jnp.tile(params['pos'].T, (1, W))                     # (C, WH)
    # all square weights + scaled same-group matrix in one resident slab
    gid = jnp.arange(C) // Cg
    gmat = (gid[:, None] == gid[None, :]).astype(jnp.float32) / float(WH * Cg)
    w_packed = jnp.concatenate(
        [params['wq'], params['wk'], params['wv'],
         params['wo'], params['wd'], gmat], axis=0)                  # (6C, C)
    vec_packed = jnp.stack(
        [params['gn1_w'], params['gn1_b'], params['gn2_w'], params['gn2_b'],
         params['bq'], params['bk'], params['bv'], params['bo'], params['bd']],
        axis=1)                                                      # (C, 9)
    # additive attention mask for ONE strip (identical for every aligned strip):
    # local positions i, j interact iff they belong to the same column block.
    idx = jnp.arange(strip)
    same_col = (idx[:, None] // H) == (idx[None, :] // H)
    bias = jnp.where(same_col, 0.0, -1e30).astype(jnp.float32)       # (strip, strip)

    kernel = functools.partial(_axial_block_kernel, strip=strip, n_strips=n_strips)
    out2 = pl.pallas_call(
        kernel,
        grid=(B,),
        in_specs=[
            pl.BlockSpec((1, C, WH), lambda b: (b, 0, 0)),    # per-sample slab
            pl.BlockSpec((C, WH), lambda b: (0, 0)),          # pos embedding
            pl.BlockSpec((6 * C, C), lambda b: (0, 0)),       # packed weights
            pl.BlockSpec((C, 9), lambda b: (0, 0)),           # packed vectors
            pl.BlockSpec((strip, strip), lambda b: (0, 0)),   # additive mask
        ],
        out_specs=pl.BlockSpec((1, C, WH), lambda b: (b, 0, 0)),
        out_shape=jax.ShapeDtypeStruct((B, C, WH), jnp.float32),
        compiler_params=pltpu.CompilerParams(
            dimension_semantics=("parallel",),
            # explicit scoped-VMEM budget (review item); working set here is
            # < 1 MiB — re-budget when scaling H*W.
            vmem_limit_bytes=32 * 1024 * 1024),
    )(x2, pos_flat, w_packed, vec_packed, bias)
    return jnp.transpose(out2.reshape(B, C, W, H), (0, 1, 3, 2))


def init_params(key, C, H):
    """Deterministic synthetic parameters (shapes match the torch module)."""
    ks = jax.random.split(key, 15)
    std = 1.0 / math.sqrt(C)
    n = jax.random.normal
    return dict(
        pos=0.02 * n(ks[0], (H, C), jnp.float32),
        gn1_w=1.0 + 0.1 * n(ks[1], (C,), jnp.float32),
        gn1_b=0.1 * n(ks[2], (C,), jnp.float32),
        gn2_w=1.0 + 0.1 * n(ks[3], (C,), jnp.float32),
        gn2_b=0.1 * n(ks[4], (C,), jnp.float32),
        wq=std * n(ks[5], (C, C), jnp.float32),
        wk=std * n(ks[6], (C, C), jnp.float32),
        wv=std * n(ks[7], (C, C), jnp.float32),
        wo=std * n(ks[8], (C, C), jnp.float32),
        wd=std * n(ks[9], (C, C), jnp.float32),
        bq=0.1 * n(ks[10], (C,), jnp.float32),
        bk=0.1 * n(ks[11], (C,), jnp.float32),
        bv=0.1 * n(ks[12], (C,), jnp.float32),
        bo=0.1 * n(ks[13], (C,), jnp.float32),
        bd=0.1 * n(ks[14], (C,), jnp.float32),
    )


def reference(x_nchw, p):
    """Plain-JAX reference with identical (eval-mode) semantics, f32 matmuls."""
    C = x_nchw.shape[1]
    G = _num_groups(C)
    prec = jax.lax.Precision.HIGHEST
    x = jnp.transpose(x_nchw, (0, 3, 2, 1))    # (B, W, H, C) jax layout
    B, W, H, _ = x.shape

    def gn(h, gamma, beta):
        hr = h.reshape(B, W, H, G, C // G)
        mean = hr.mean(axis=(1, 2, 4), keepdims=True)
        var = hr.var(axis=(1, 2, 4), keepdims=True)
        hn = (hr - mean) / jnp.sqrt(var + 1e-5)
        return hn.reshape(B, W, H, C) * gamma + beta

    def proj(h, w_, b_):
        return jnp.einsum('bwhc,dc->bwhd', h, w_, precision=prec) + b_

    h = x + p['pos'][None, None]
    h = gn(h, p['gn1_w'], p['gn1_b'])
    q = proj(h, p['wq'], p['bq'])
    k = proj(h, p['wk'], p['bk'])
    v = proj(h, p['wv'], p['bv'])
    s = jnp.einsum('bwhc,bwgc->bwhg', q, k, precision=prec) / math.sqrt(C)
    a = jax.nn.softmax(s, axis=-1)
    ctx = jnp.einsum('bwhg,bwgc->bwhc', a, v, precision=prec)
    h = proj(ctx, p['wo'], p['bo'])
    h = gn(h, p['gn2_w'], p['gn2_b'])
    h = proj(h, p['wd'], p['bd'])
    out = (h + x) / math.sqrt(2.0)
    return jnp.transpose(out, (0, 3, 2, 1))


if __name__ == "__main__":
    B, C, H, W = 2, 8, 16, 16          # NCHW like torch; GroupNorm groups = 2

    key = jax.random.PRNGKey(0)
    kx, kp = jax.random.split(key)
    x = jax.random.normal(kx, (B, C, H, W), jnp.float32)
    params = init_params(kp, C, H)

    out = jax.block_until_ready(axial_self_attention_block(x, params))
    ref = reference(x, params)

    assert out.shape == x.shape and out.dtype == jnp.float32
    # Tolerance sized for the deliberate bf16 attention-MXU operands (review
    # item) whose input rounding is amplified by GroupNorm's 1/sigma; with
    # full-f32 attention matmuls the kernel agrees to ~2e-3.
    np.testing.assert_allclose(np.asarray(out), np.asarray(ref),
                               rtol=2e-2, atol=2e-2)
    print("KERNEL_OK")
</pallas_src>

<mosaic_0001>
module attributes {stable_mosaic.version = 11 : i64} {
  func.func @_axial_block_kernel(%arg0: i32, %arg1: memref<1x8x256xf32, #tpu.memory_space<vmem>>, %arg2: memref<8x256xf32, #tpu.memory_space<vmem>>, %arg3: memref<48x8xf32, #tpu.memory_space<vmem>>, %arg4: memref<8x9xf32, #tpu.memory_space<vmem>>, %arg5: memref<128x128xf32, #tpu.memory_space<vmem>>, %arg6: memref<1x8x256xf32, #tpu.memory_space<vmem>>) attributes {dimension_semantics = [#tpu.dimension_semantics<parallel>], iteration_bounds = array<i64: 2>, scalar_prefetch = 0 : i64, scratch_operands = 0 : i64, tpu.core_type = #tpu.core_type<tc>, window_params = [{transform_indices = @transform_0, window_bounds = array<i64: 1, 8, 256>}, {pipeline_mode = #tpu.pipeline_mode<synchronous>, transform_indices = @transform_1, window_bounds = array<i64: 8, 256>}, {pipeline_mode = #tpu.pipeline_mode<synchronous>, transform_indices = @transform_2, window_bounds = array<i64: 48, 8>}, {pipeline_mode = #tpu.pipeline_mode<synchronous>, transform_indices = @transform_3, window_bounds = array<i64: 8, 9>}, {pipeline_mode = #tpu.pipeline_mode<synchronous>, transform_indices = @transform_4, window_bounds = array<i64: 128, 128>}, {transform_indices = @transform_5, window_bounds = array<i64: 1, 8, 256>}]} {
    %c0 = arith.constant 0 : index
    %c0_0 = arith.constant 0 : index
    %c0_1 = arith.constant 0 : index
    %0 = vector.load %arg1[%c0, %c0_0, %c0_1] : memref<1x8x256xf32, #tpu.memory_space<vmem>>, vector<1x8x256xf32>
    %1 = vector.shape_cast %0 : vector<1x8x256xf32> to vector<8x256xf32>
    %c0_2 = arith.constant 0 : index
    %c0_3 = arith.constant 0 : index
    %2 = vector.load %arg3[%c0_2, %c0_3] : memref<48x8xf32, #tpu.memory_space<vmem>>, vector<48x8xf32>
    %c0_4 = arith.constant 0 : index
    %c0_5 = arith.constant 0 : index
    %3 = vector.load %arg4[%c0_4, %c0_5] : memref<8x9xf32, #tpu.memory_space<vmem>>, vector<8x9xf32>
    %c0_6 = arith.constant 0 : index
    %c0_7 = arith.constant 0 : index
    %4 = vector.load %arg5[%c0_6, %c0_7] : memref<128x128xf32, #tpu.memory_space<vmem>>, vector<128x128xf32>
    %5 = vector.extract_strided_slice %2 {offsets = [0, 0], sizes = [24, 8], strides = [1, 1]} : vector<48x8xf32> to vector<24x8xf32>
    %6 = vector.extract_strided_slice %2 {offsets = [24, 0], sizes = [8, 8], strides = [1, 1]} : vector<48x8xf32> to vector<8x8xf32>
    %7 = vector.extract_strided_slice %2 {offsets = [32, 0], sizes = [8, 8], strides = [1, 1]} : vector<48x8xf32> to vector<8x8xf32>
    %8 = vector.extract_strided_slice %2 {offsets = [40, 0], sizes = [8, 8], strides = [1, 1]} : vector<48x8xf32> to vector<8x8xf32>
    %9 = vector.extract_strided_slice %3 {offsets = [0, 0], sizes = [8, 1], strides = [1, 1]} : vector<8x9xf32> to vector<8x1xf32>
    %10 = vector.extract_strided_slice %3 {offsets = [0, 1], sizes = [8, 1], strides = [1, 1]} : vector<8x9xf32> to vector<8x1xf32>
    %11 = vector.extract_strided_slice %3 {offsets = [0, 2], sizes = [8, 1], strides = [1, 1]} : vector<8x9xf32> to vector<8x1xf32>
    %12 = vector.extract_strided_slice %3 {offsets = [0, 3], sizes = [8, 1], strides = [1, 1]} : vector<8x9xf32> to vector<8x1xf32>
    %13 = vector.extract_strided_slice %3 {offsets = [0, 4], sizes = [8, 1], strides = [1, 1]} : vector<8x9xf32> to vector<8x1xf32>
    %14 = vector.extract_strided_slice %3 {offsets = [0, 5], sizes = [8, 1], strides = [1, 1]} : vector<8x9xf32> to vector<8x1xf32>
    %15 = vector.extract_strided_slice %3 {offsets = [0, 6], sizes = [8, 1], strides = [1, 1]} : vector<8x9xf32> to vector<8x1xf32>
    %16 = vector.extract_strided_slice %3 {offsets = [0, 7], sizes = [8, 1], strides = [1, 1]} : vector<8x9xf32> to vector<8x1xf32>
    %17 = vector.extract_strided_slice %3 {offsets = [0, 8], sizes = [8, 1], strides = [1, 1]} : vector<8x9xf32> to vector<8x1xf32>
    %c0_8 = arith.constant 0 : index
    %c0_9 = arith.constant 0 : index
    %18 = vector.load %arg2[%c0_8, %c0_9] : memref<8x256xf32, #tpu.memory_space<vmem>>, vector<8x256xf32>
    %19 = arith.addf %1, %18 : vector<8x256xf32>
    %cst = arith.constant dense<0.000000e+00> : vector<8xf32>
    %20 = vector.multi_reduction <add>, %19, %cst [1] : vector<8x256xf32> to vector<8xf32>
    %21 = vector.shape_cast %20 : vector<8xf32> to vector<8x1xf32>
    %cst_10 = arith.constant dense<0.000000e+00> : vector<8x1xf32>
    %22 = tpu.matmul %8, %21, %cst_10 {dimension_numbers = #tpu.dot_dimension_numbers<[1], [0], [0], [1], [0, 0, 1, 1], [], []>} : vector<8x8xf32>, vector<8x1xf32>, vector<8x1xf32> -> vector<8x1xf32>
    %23 = vector.broadcast %22 : vector<8x1xf32> to vector<8x256xf32>
    %24 = arith.subf %19, %23 : vector<8x256xf32>
    %25 = arith.mulf %24, %24 : vector<8x256xf32>
    %cst_11 = arith.constant dense<0.000000e+00> : vector<8xf32>
    %26 = vector.multi_reduction <add>, %25, %cst_11 [1] : vector<8x256xf32> to vector<8xf32>
    %27 = vector.shape_cast %26 : vector<8xf32> to vector<8x1xf32>
    %cst_12 = arith.constant dense<0.000000e+00> : vector<8x1xf32>
    %28 = tpu.matmul %8, %27, %cst_12 {dimension_numbers = #tpu.dot_dimension_numbers<[1], [0], [0], [1], [0, 0, 1, 1], [], []>} : vector<8x8xf32>, vector<8x1xf32>, vector<8x1xf32> -> vector<8x1xf32>
    %cst_13 = arith.constant 9.99999974E-6 : f32
    %29 = vector.broadcast %cst_13 : f32 to vector<8x1xf32>
    %30 = arith.addf %28, %29 : vector<8x1xf32>
    %31 = math.rsqrt %30 : vector<8x1xf32>
    %32 = arith.mulf %31, %9 : vector<8x1xf32>
    %33 = vector.broadcast %32 : vector<8x1xf32> to vector<8x256xf32>
    %34 = arith.mulf %24, %33 : vector<8x256xf32>
    %35 = vector.broadcast %10 : vector<8x1xf32> to vector<8x256xf32>
    %36 = arith.addf %34, %35 : vector<8x256xf32>
    %cst_14 = arith.constant dense<0.000000e+00> : vector<24x256xf32>
    %37 = tpu.matmul %5, %36, %cst_14 {dimension_numbers = #tpu.dot_dimension_numbers<[1], [0], [0], [1], [0, 0, 1, 1], [], []>} : vector<24x8xf32>, vector<8x256xf32>, vector<24x256xf32> -> vector<24x256xf32>
    %38 = vector.extract_strided_slice %37 {offsets = [0, 0], sizes = [8, 256], strides = [1, 1]} : vector<24x256xf32> to vector<8x256xf32>
    %39 = vector.broadcast %13 : vector<8x1xf32> to vector<8x256xf32>
    %40 = arith.addf %38, %39 : vector<8x256xf32>
    %cst_15 = arith.constant 0.353553385 : f32
    %41 = vector.broadcast %cst_15 : f32 to vector<8x256xf32>
    %42 = arith.mulf %40, %41 : vector<8x256xf32>
    %43 = arith.truncf %42 : vector<8x256xf32> to vector<8x256xbf16>
    %44 = vector.extract_strided_slice %37 {offsets = [8, 0], sizes = [8, 256], strides = [1, 1]} : vector<24x256xf32> to vector<8x256xf32>
    %45 = vector.broadcast %14 : vector<8x1xf32> to vector<8x256xf32>
    %46 = arith.addf %44, %45 : vector<8x256xf32>
    %47 = arith.truncf %46 : vector<8x256xf32> to vector<8x256xbf16>
    %48 = vector.extract_strided_slice %37 {offsets = [16, 0], sizes = [8, 256], strides = [1, 1]} : vector<24x256xf32> to vector<8x256xf32>
    %49 = vector.broadcast %15 : vector<8x1xf32> to vector<8x256xf32>
    %50 = arith.addf %48, %49 : vector<8x256xf32>
    %51 = arith.truncf %50 : vector<8x256xf32> to vector<8x256xbf16>
    %52 = vector.extract_strided_slice %43 {offsets = [0, 0], sizes = [8, 128], strides = [1, 1]} : vector<8x256xbf16> to vector<8x128xbf16>
    %53 = vector.extract_strided_slice %47 {offsets = [0, 0], sizes = [8, 128], strides = [1, 1]} : vector<8x256xbf16> to vector<8x128xbf16>
    %54 = vector.extract_strided_slice %51 {offsets = [0, 0], sizes = [8, 128], strides = [1, 1]} : vector<8x256xbf16> to vector<8x128xbf16>
    %cst_16 = arith.constant dense<0.000000e+00> : vector<128x128xf32>
    %55 = tpu.matmul %52, %53, %cst_16 {dimension_numbers = #tpu.dot_dimension_numbers<[0], [0], [1], [1], [0, 1, 1, 1], [], []>} : vector<8x128xbf16>, vector<8x128xbf16>, vector<128x128xf32> -> vector<128x128xf32>
    %56 = arith.addf %55, %4 : vector<128x128xf32>
    %cst_17 = arith.constant dense<0xFF800000> : vector<128xf32>
    %57 = vector.multi_reduction <maximumf>, %56, %cst_17 [1] : vector<128x128xf32> to vector<128xf32>
    %58 = vector.shape_cast %57 : vector<128xf32> to vector<128x1xf32>
    %59 = vector.broadcast %58 : vector<128x1xf32> to vector<128x128xf32>
    %60 = arith.subf %56, %59 : vector<128x128xf32>
    %61 = math.exp %60 : vector<128x128xf32>
    %cst_18 = arith.constant dense<0.000000e+00> : vector<128xf32>
    %62 = vector.multi_reduction <add>, %61, %cst_18 [1] : vector<128x128xf32> to vector<128xf32>
    %63 = vector.shape_cast %62 : vector<128xf32> to vector<128x1xf32>
    %64 = tpu.reciprocal %63 {approx = true} : vector<128x1xf32> -> vector<128x1xf32>
    %65 = arith.mulf %63, %64 : vector<128x1xf32>
    %cst_19 = arith.constant 2.000000e+00 : f32
    %66 = vector.broadcast %cst_19 : f32 to vector<128x1xf32>
    %67 = arith.subf %66, %65 : vector<128x1xf32>
    %68 = arith.mulf %64, %67 : vector<128x1xf32>
    %69 = vector.broadcast %68 : vector<128x1xf32> to vector<128x128xf32>
    %70 = arith.mulf %61, %69 : vector<128x128xf32>
    %71 = arith.truncf %70 : vector<128x128xf32> to vector<128x128xbf16>
    %cst_20 = arith.constant dense<0.000000e+00> : vector<8x128xf32>
    %72 = tpu.matmul %54, %71, %cst_20 {dimension_numbers = #tpu.dot_dimension_numbers<[1], [1], [0], [0], [0, 0, 1, 0], [], []>} : vector<8x128xbf16>, vector<128x128xbf16>, vector<8x128xf32> -> vector<8x128xf32>
    %73 = vector.extract_strided_slice %43 {offsets = [0, 128], sizes = [8, 128], strides = [1, 1]} : vector<8x256xbf16> to vector<8x128xbf16>
    %74 = vector.extract_strided_slice %47 {offsets = [0, 128], sizes = [8, 128], strides = [1, 1]} : vector<8x256xbf16> to vector<8x128xbf16>
    %75 = vector.extract_strided_slice %51 {offsets = [0, 128], sizes = [8, 128], strides = [1, 1]} : vector<8x256xbf16> to vector<8x128xbf16>
    %cst_21 = arith.constant dense<0.000000e+00> : vector<128x128xf32>
    %76 = tpu.matmul %73, %74, %cst_21 {dimension_numbers = #tpu.dot_dimension_numbers<[0], [0], [1], [1], [0, 1, 1, 1], [], []>} : vector<8x128xbf16>, vector<8x128xbf16>, vector<128x128xf32> -> vector<128x128xf32>
    %77 = arith.addf %76, %4 : vector<128x128xf32>
    %cst_22 = arith.constant dense<0xFF800000> : vector<128xf32>
    %78 = vector.multi_reduction <maximumf>, %77, %cst_22 [1] : vector<128x128xf32> to vector<128xf32>
    %79 = vector.shape_cast %78 : vector<128xf32> to vector<128x1xf32>
    %80 = vector.broadcast %79 : vector<128x1xf32> to vector<128x128xf32>
    %81 = arith.subf %77, %80 : vector<128x128xf32>
    %82 = math.exp %81 : vector<128x128xf32>
    %cst_23 = arith.constant dense<0.000000e+00> : vector<128xf32>
    %83 = vector.multi_reduction <add>, %82, %cst_23 [1] : vector<128x128xf32> to vector<128xf32>
    %84 = vector.shape_cast %83 : vector<128xf32> to vector<128x1xf32>
    %85 = tpu.reciprocal %84 {approx = true} : vector<128x1xf32> -> vector<128x1xf32>
    %86 = arith.mulf %84, %85 : vector<128x1xf32>
    %cst_24 = arith.constant 2.000000e+00 : f32
    %87 = vector.broadcast %cst_24 : f32 to vector<128x1xf32>
    %88 = arith.subf %87, %86 : vector<128x1xf32>
    %89 = arith.mulf %85, %88 : vector<128x1xf32>
    %90 = vector.broadcast %89 : vector<128x1xf32> to vector<128x128xf32>
    %91 = arith.mulf %82, %90 : vector<128x128xf32>
    %92 = arith.truncf %91 : vector<128x128xf32> to vector<128x128xbf16>
    %cst_25 = arith.constant dense<0.000000e+00> : vector<8x128xf32>
    %93 = tpu.matmul %75, %92, %cst_25 {dimension_numbers = #tpu.dot_dimension_numbers<[1], [1], [0], [0], [0, 0, 1, 0], [], []>} : vector<8x128xbf16>, vector<128x128xbf16>, vector<8x128xf32> -> vector<8x128xf32>
    %94 = tpu.concatenate %72, %93 in 1 : vector<8x128xf32>, vector<8x128xf32> -> vector<8x256xf32>
    %cst_26 = arith.constant dense<0.000000e+00> : vector<8x256xf32>
    %95 = tpu.matmul %6, %94, %cst_26 {dimension_numbers = #tpu.dot_dimension_numbers<[1], [0], [0], [1], [0, 0, 1, 1], [], []>} : vector<8x8xf32>, vector<8x256xf32>, vector<8x256xf32> -> vector<8x256xf32>
    %96 = vector.broadcast %16 : vector<8x1xf32> to vector<8x256xf32>
    %97 = arith.addf %95, %96 : vector<8x256xf32>
    %cst_27 = arith.constant dense<0.000000e+00> : vector<8xf32>
    %98 = vector.multi_reduction <add>, %97, %cst_27 [1] : vector<8x256xf32> to vector<8xf32>
    %99 = vector.shape_cast %98 : vector<8xf32> to vector<8x1xf32>
    %cst_28 = arith.constant dense<0.000000e+00> : vector<8x1xf32>
    %100 = tpu.matmul %8, %99, %cst_28 {dimension_numbers = #tpu.dot_dimension_numbers<[1], [0], [0], [1], [0, 0, 1, 1], [], []>} : vector<8x8xf32>, vector<8x1xf32>, vector<8x1xf32> -> vector<8x1xf32>
    %101 = vector.broadcast %100 : vector<8x1xf32> to vector<8x256xf32>
    %102 = arith.subf %97, %101 : vector<8x256xf32>
    %103 = arith.mulf %102, %102 : vector<8x256xf32>
    %cst_29 = arith.constant dense<0.000000e+00> : vector<8xf32>
    %104 = vector.multi_reduction <add>, %103, %cst_29 [1] : vector<8x256xf32> to vector<8xf32>
    %105 = vector.shape_cast %104 : vector<8xf32> to vector<8x1xf32>
    %cst_30 = arith.constant dense<0.000000e+00> : vector<8x1xf32>
    %106 = tpu.matmul %8, %105, %cst_30 {dimension_numbers = #tpu.dot_dimension_numbers<[1], [0], [0], [1], [0, 0, 1, 1], [], []>} : vector<8x8xf32>, vector<8x1xf32>, vector<8x1xf32> -> vector<8x1xf32>
    %cst_31 = arith.constant 9.99999974E-6 : f32
    %107 = vector.broadcast %cst_31 : f32 to vector<8x1xf32>
    %108 = arith.addf %106, %107 : vector<8x1xf32>
    %109 = math.rsqrt %108 : vector<8x1xf32>
    %110 = arith.mulf %109, %11 : vector<8x1xf32>
    %111 = vector.broadcast %110 : vector<8x1xf32> to vector<8x256xf32>
    %112 = arith.mulf %102, %111 : vector<8x256xf32>
    %113 = vector.broadcast %12 : vector<8x1xf32> to vector<8x256xf32>
    %114 = arith.addf %112, %113 : vector<8x256xf32>
    %cst_32 = arith.constant dense<0.000000e+00> : vector<8x256xf32>
    %115 = tpu.matmul %7, %114, %cst_32 {dimension_numbers = #tpu.dot_dimension_numbers<[1], [0], [0], [1], [0, 0, 1, 1], [], []>} : vector<8x8xf32>, vector<8x256xf32>, vector<8x256xf32> -> vector<8x256xf32>
    %116 = vector.broadcast %17 : vector<8x1xf32> to vector<8x256xf32>
    %117 = arith.addf %115, %116 : vector<8x256xf32>
    %118 = arith.addf %117, %1 : vector<8x256xf32>
    %cst_33 = arith.constant 0.707106769 : f32
    %119 = vector.broadcast %cst_33 : f32 to vector<8x256xf32>
    %120 = arith.mulf %118, %119 : vector<8x256xf32>
    %c0_34 = arith.constant 0 : index
    %c0_35 = arith.constant 0 : index
    %c0_36 = arith.constant 0 : index
    %121 = vector.load %arg6[%c0_34, %c0_35, %c0_36] : memref<1x8x256xf32, #tpu.memory_space<vmem>>, vector<1x8x256xf32>
    %122 = vector.shape_cast %121 : vector<1x8x256xf32> to vector<8x256xf32>
    %123 = vector.shape_cast %120 : vector<8x256xf32> to vector<1x8x256xf32>
    tpu.vector_store %arg6[%c0_34, %c0_35, %c0_36], %123 {strides = array<i32>} : memref<1x8x256xf32, #tpu.memory_space<vmem>>, vector<1x8x256xf32>,
    return
  }
  func.func @transform_0(%arg0: i32) -> (i32, i32, i32) {
    %c0_i32 = arith.constant 0 : i32
    %c0_i32_0 = arith.constant 0 : i32
    %c0_i32_1 = arith.constant 0 : i32
    return %arg0, %c0_i32, %c0_i32_0 : i32, i32, i32
  }
  func.func @transform_1(%arg0: i32) -> (i32, i32) {
    %c0_i32 = arith.constant 0 : i32
    %c0_i32_0 = arith.constant 0 : i32
    %c0_i32_1 = arith.constant 0 : i32
    return %c0_i32, %c0_i32_0 : i32, i32
  }
  func.func @transform_2(%arg0: i32) -> (i32, i32) {
    %c0_i32 = arith.constant 0 : i32
    %c0_i32_0 = arith.constant 0 : i32
    %c0_i32_1 = arith.constant 0 : i32
    return %c0_i32, %c0_i32_0 : i32, i32
  }
  func.func @transform_3(%arg0: i32) -> (i32, i32) {
    %c0_i32 = arith.constant 0 : i32
    %c0_i32_0 = arith.constant 0 : i32
    %c0_i32_1 = arith.constant 0 : i32
    return %c0_i32, %c0_i32_0 : i32, i32
  }
  func.func @transform_4(%arg0: i32) -> (i32, i32) {
    %c0_i32 = arith.constant 0 : i32
    %c0_i32_0 = arith.constant 0 : i32
    %c0_i32_1 = arith.constant 0 : i32
    return %c0_i32, %c0_i32_0 : i32, i32
  }
  func.func @transform_5(%arg0: i32) -> (i32, i32, i32) {
    %c0_i32 = arith.constant 0 : i32
    %c0_i32_0 = arith.constant 0 : i32
    %c0_i32_1 = arith.constant 0 : i32
    return %arg0, %c0_i32, %c0_i32_0 : i32, i32, i32
  }
}

</mosaic_0001>

<llo_original>
// kernel: tile.9
$region0: #{tile.9}
  %s0 = inlined_call_operand.vmem [shape: f32[8,16,16], index: 0, kind: input, shape index: {}]
  %s1 = inlined_call_operand.vmem [shape: f32[8,256], index: 1, kind: output, shape index: {}]
  %v2 = vld [vmem:[%s0] ss:$8 sm:$0xf]
  %v3 = vld [vmem:[%s0] ss:$8 sm:$0xf0]
  %vm4 = vcmask 1047556
  %v5 = vsel %vm4, %v3, %v2
  %vm6 = vcmask 130048
  %7 = vst.msk [vmem:[%s1] ss:$8 sm:$0x3] %vm6, %v5
  %s8 = scalar_lea.vmem %s1, 4294967281
  %9 = vst.msk [vmem:[%s8] ss:$8 sm:$0xc] %vm6, %v5
  %s10 = scalar_lea.vmem %s1, 4294967266
  %11 = vst.msk [vmem:[%s10] ss:$8 sm:$0x30] %vm6, %v5
  %s12 = scalar_lea.vmem %s1, 4294967251
  %13 = vst.msk [vmem:[%s12] ss:$8 sm:$0xc0] %vm6, %v5
  %s14 = scalar_lea.vmem %s0, 64
  %v15 = vld [vmem:[%s14] ss:$8 sm:$0xf]
  %s16 = scalar_lea.vmem %s0, 64
  %v17 = vld [vmem:[%s16] ss:$8 sm:$0xf0]
  %vm18 = vcmask 1047556
  %v19 = vsel %vm18, %v17, %v15
  %vm20 = vcmask 130048
  %s21 = scalar_lea.vmem %s1, 4
  %22 = vst.msk [vmem:[%s21] ss:$8 sm:$0x3] %vm20, %v19
  %s23 = scalar_lea.vmem %s1, 4294967285
  %24 = vst.msk [vmem:[%s23] ss:$8 sm:$0xc] %vm20, %v19
  %s25 = scalar_lea.vmem %s1, 4294967270
  %26 = vst.msk [vmem:[%s25] ss:$8 sm:$0x30] %vm20, %v19
  %s27 = scalar_lea.vmem %s1, 4294967255
  %28 = vst.msk [vmem:[%s27] ss:$8 sm:$0xc0] %vm20, %v19
  %s29 = scalar_lea.vmem %s0, 7
  %s30 = smov 3
  %v31 = vld [vmem:[%s29] ss:$16 sm:%s30]
  %s32 = scalar_lea.vmem %s0, 7
  %s33 = smov 12
  %v34 = vld [vmem:[%s32] ss:$16 sm:%s33]
  %vm35 = vcmask 1043458
  %v36 = vsel %vm35, %v34, %v31
  %s37 = scalar_lea.vmem %s0, 7
  %s38 = smov 48
  %v39 = vld [vmem:[%s37] ss:$16 sm:%s38]
  %vm40 = vcmask 1045508
  %v41 = vsel %vm40, %v39, %v36
  %s42 = scalar_lea.vmem %s0, 7
  %s43 = smov 192
  %v44 = vld [vmem:[%s42] ss:$16 sm:%s43]
  %vm45 = vcmask 1047558
  %v46 = vsel %vm45, %v44, %v41
  %47 = vrot.lane.b32.xlu0 %v46, 112
  %v48 = vpop.permute.xlu0 %47
  %vm49 = vcmask 1048448
  %50 = vst.msk [vmem:[%s1] sm:$0xff] %vm49, %v48
  %s51 = scalar_lea.vmem %s0, 15
  %s52 = smov 3
  %v53 = vld [vmem:[%s51] ss:$16 sm:%s52]
  %s54 = scalar_lea.vmem %s0, 15
  %s55 = smov 12
  %v56 = vld [vmem:[%s54] ss:$16 sm:%s55]
  %vm57 = vcmask 1043458
  %v58 = vsel %vm57, %v56, %v53
  %s59 = scalar_lea.vmem %s0, 15
  %s60 = smov 48
  %v61 = vld [vmem:[%s59] ss:$16 sm:%s60]
  %vm62 = vcmask 1045508
  %v63 = vsel %vm62, %v61, %v58
  %s64 = scalar_lea.vmem %s0, 15
  %s65 = smov 192
  %v66 = vld [vmem:[%s64] ss:$16 sm:%s65]
  %vm67 = vcmask 1047558
  %v68 = vsel %vm67, %v66, %v63
  %69 = vrot.lane.b32.xlu0 %v68, 112
  %v70 = vpop.permute.xlu0 %69
  %vm71 = vcmask 1048448
  %s72 = scalar_lea.vmem %s1, 8
  %73 = vst.msk [vmem:[%s72] sm:$0xff] %vm71, %v70
  %s74 = scalar_lea.vmem %s0, 6
  %s75 = smov 3
  %v76 = vld [vmem:[%s74] ss:$16 sm:%s75]
  %s77 = scalar_lea.vmem %s0, 6
  %s78 = smov 12
  %v79 = vld [vmem:[%s77] ss:$16 sm:%s78]
  %vm80 = vcmask 1043458
  %v81 = vsel %vm80, %v79, %v76
  %s82 = scalar_lea.vmem %s0, 6
  %s83 = smov 48
  %v84 = vld [vmem:[%s82] ss:$16 sm:%s83]
  %vm85 = vcmask 1045508
  %v86 = vsel %vm85, %v84, %v81
  %s87 = scalar_lea.vmem %s0, 6
  %s88 = smov 192
  %v89 = vld [vmem:[%s87] ss:$16 sm:%s88]
  %vm90 = vcmask 1047558
  %v91 = vsel %vm90, %v89, %v86
  %92 = vrot.lane.b32.xlu0 %v91, 96
  %v93 = vpop.permute.xlu0 %92
  %vm94 = vcmask 917248
  %95 = vst.msk [vmem:[%s1] sm:$0xff] %vm94, %v93
  %s96 = scalar_lea.vmem %s0, 14
  %s97 = smov 3
  %v98 = vld [vmem:[%s96] ss:$16 sm:%s97]
  %s99 = scalar_lea.vmem %s0, 14
  %s100 = smov 12
  %v101 = vld [vmem:[%s99] ss:$16 sm:%s100]
  %vm102 = vcmask 1043458
  %v103 = vsel %vm102, %v101, %v98
  %s104 = scalar_lea.vmem %s0, 14
  %s105 = smov 48
  %v106 = vld [vmem:[%s104] ss:$16 sm:%s105]
  %vm107 = vcmask 1045508
  %v108 = vsel %vm107, %v106, %v103
  %s109 = scalar_lea.vmem %s0, 14
  %s110 = smov 192
  %v111 = vld [vmem:[%s109] ss:$16 sm:%s110]
  %vm112 = vcmask 1047558
  %v113 = vsel %vm112, %v111, %v108
  %114 = vrot.lane.b32.xlu0 %v113, 96
  %v115 = vpop.permute.xlu0 %114
  %vm116 = vcmask 917248
  %s117 = scalar_lea.vmem %s1, 8
  %118 = vst.msk [vmem:[%s117] sm:$0xff] %vm116, %v115
  %s119 = scalar_lea.vmem %s0, 5
  %s120 = smov 3
  %v121 = vld [vmem:[%s119] ss:$16 sm:%s120]
  %s122 = scalar_lea.vmem %s0, 5
  %s123 = smov 12
  %v124 = vld [vmem:[%s122] ss:$16 sm:%s123]
  %vm125 = vcmask 1043458
  %v126 = vsel %vm125, %v124, %v121
  %s127 = scalar_lea.vmem %s0, 5
  %s128 = smov 48
  %v129 = vld [vmem:[%s127] ss:$16 sm:%s128]
  %vm130 = vcmask 1045508
  %v131 = vsel %vm130, %v129, %v126
  %s132 = scalar_lea.vmem %s0, 5
  %s133 = smov 192
  %v134 = vld [vmem:[%s132] ss:$16 sm:%s133]
  %vm135 = vcmask 1047558
  %v136 = vsel %vm135, %v134, %v131
  %137 = vrot.lane.b32.xlu0 %v136, 80
  %v138 = vpop.permute.xlu0 %137
  %vm139 = vcmask 786048
  %140 = vst.msk [vmem:[%s1] sm:$0xff] %vm139, %v138
  %s141 = scalar_lea.vmem %s0, 13
  %s142 = smov 3
  %v143 = vld [vmem:[%s141] ss:$16 sm:%s142]
  %s144 = scalar_lea.vmem %s0, 13
  %s145 = smov 12
  %v146 = vld [vmem:[%s144] ss:$16 sm:%s145]
  %vm147 = vcmask 1043458
  %v148 = vsel %vm147, %v146, %v143
  %s149 = scalar_lea.vmem %s0, 13
  %s150 = smov 48
  %v151 = vld [vmem:[%s149] ss:$16 sm:%s150]
  %vm152 = vcmask 1045508
  %v153 = vsel %vm152, %v151, %v148
  %s154 = scalar_lea.vmem %s0, 13
  %s155 = smov 192
  %v156 = vld [vmem:[%s154] ss:$16 sm:%s155]
  %vm157 = vcmask 1047558
  %v158 = vsel %vm157, %v156, %v153
  %159 = vrot.lane.b32.xlu0 %v158, 80
  %v160 = vpop.permute.xlu0 %159
  %vm161 = vcmask 786048
  %s162 = scalar_lea.vmem %s1, 8
  %163 = vst.msk [vmem:[%s162] sm:$0xff] %vm161, %v160
  %s164 = scalar_lea.vmem %s0, 4
  %s165 = smov 3
  %v166 = vld [vmem:[%s164] ss:$16 sm:%s165]
  %s167 = scalar_lea.vmem %s0, 4
  %s168 = smov 12
  %v169 = vld [vmem:[%s167] ss:$16 sm:%s168]
  %vm170 = vcmask 1043458
  %v171 = vsel %vm170, %v169, %v166
  %s172 = scalar_lea.vmem %s0, 4
  %s173 = smov 48
  %v174 = vld [vmem:[%s172] ss:$16 sm:%s173]
  %vm175 = vcmask 1045508
  %v176 = vsel %vm175, %v174, %v171
  %s177 = scalar_lea.vmem %s0, 4
  %s178 = smov 192
  %v179 = vld [vmem:[%s177] ss:$16 sm:%s178]
  %vm180 = vcmask 1047558
  %v181 = vsel %vm180, %v179, %v176
  %182 = vrot.lane.b32.xlu0 %v181, 64
  %v183 = vpop.permute.xlu0 %182
  %vm184 = vcmask 654848
  %185 = vst.msk [vmem:[%s1] sm:$0xff] %vm184, %v183
  %s186 = scalar_lea.vmem %s0, 12
  %s187 = smov 3
  %v188 = vld [vmem:[%s186] ss:$16 sm:%s187]
  %s189 = scalar_lea.vmem %s0, 12
  %s190 = smov 12
  %v191 = vld [vmem:[%s189] ss:$16 sm:%s190]
  %vm192 = vcmask 1043458
  %v193 = vsel %vm192, %v191, %v188
  %s194 = scalar_lea.vmem %s0, 12
  %s195 = smov 48
  %v196 = vld [vmem:[%s194] ss:$16 sm:%s195]
  %vm197 = vcmask 1045508
  %v198 = vsel %vm197, %v196, %v193
  %s199 = scalar_lea.vmem %s0, 12
  %s200 = smov 192
  %v201 = vld [vmem:[%s199] ss:$16 sm:%s200]
  %vm202 = vcmask 1047558
  %v203 = vsel %vm202, %v201, %v198
  %204 = vrot.lane.b32.xlu0 %v203, 64
  %v205 = vpop.permute.xlu0 %204
  %vm206 = vcmask 654848
  %s207 = scalar_lea.vmem %s1, 8
  %208 = vst.msk [vmem:[%s207] sm:$0xff] %vm206, %v205
  %s209 = scalar_lea.vmem %s0, 3
  %s210 = smov 3
  %v211 = vld [vmem:[%s209] ss:$16 sm:%s210]
  %s212 = scalar_lea.vmem %s0, 3
  %s213 = smov 12
  %v214 = vld [vmem:[%s212] ss:$16 sm:%s213]
  %vm215 = vcmask 1043458
  %v216 = vsel %vm215, %v214, %v211
  %s217 = scalar_lea.vmem %s0, 3
  %s218 = smov 48
  %v219 = vld [vmem:[%s217] ss:$16 sm:%s218]
  %vm220 = vcmask 1045508
  %v221 = vsel %vm220, %v219, %v216
  %s222 = scalar_lea.vmem %s0, 3
  %s223 = smov 192
  %v224 = vld [vmem:[%s222] ss:$16 sm:%s223]
  %vm225 = vcmask 1047558
  %v226 = vsel %vm225, %v224, %v221
  %227 = vrot.lane.b32.xlu0 %v226, 48
  %v228 = vpop.permute.xlu0 %227
  %vm229 = vcmask 523648
  %230 = vst.msk [vmem:[%s1] sm:$0xff] %vm229, %v228
  %s231 = scalar_lea.vmem %s0, 11
  %s232 = smov 3
  %v233 = vld [vmem:[%s231] ss:$16 sm:%s232]
  %s234 = scalar_lea.vmem %s0, 11
  %s235 = smov 12
  %v236 = vld [vmem:[%s234] ss:$16 sm:%s235]
  %vm237 = vcmask 1043458
  %v238 = vsel %vm237, %v236, %v233
  %s239 = scalar_lea.vmem %s0, 11
  %s240 = smov 48
  %v241 = vld [vmem:[%s239] ss:$16 sm:%s240]
  %vm242 = vcmask 1045508
  %v243 = vsel %vm242, %v241, %v238
  %s244 = scalar_lea.vmem %s0, 11
  %s245 = smov 192
  %v246 = vld [vmem:[%s244] ss:$16 sm:%s245]
  %vm247 = vcmask 1047558
  %v248 = vsel %vm247, %v246, %v243
  %249 = vrot.lane.b32.xlu0 %v248, 48
  %v250 = vpop.permute.xlu0 %249
  %vm251 = vcmask 523648
  %s252 = scalar_lea.vmem %s1, 8
  %253 = vst.msk [vmem:[%s252] sm:$0xff] %vm251, %v250
  %s254 = scalar_lea.vmem %s0, 2
  %s255 = smov 3
  %v256 = vld [vmem:[%s254] ss:$16 sm:%s255]
  %s257 = scalar_lea.vmem %s0, 2
  %s258 = smov 12
  %v259 = vld [vmem:[%s257] ss:$16 sm:%s258]
  %vm260 = vcmask 1043458
  %v261 = vsel %vm260, %v259, %v256
  %s262 = scalar_lea.vmem %s0, 2
  %s263 = smov 48
  %v264 = vld [vmem:[%s262] ss:$16 sm:%s263]
  %vm265 = vcmask 1045508
  %v266 = vsel %vm265, %v264, %v261
  %s267 = scalar_lea.vmem %s0, 2
  %s268 = smov 192
  %v269 = vld [vmem:[%s267] ss:$16 sm:%s268]
  %vm270 = vcmask 1047558
  %v271 = vsel %vm270, %v269, %v266
  %272 = vrot.lane.b32.xlu0 %v271, 32
  %v273 = vpop.permute.xlu0 %272
  %vm274 = vcmask 392448
  %275 = vst.msk [vmem:[%s1] sm:$0xff] %vm274, %v273
  %s276 = scalar_lea.vmem %s0, 10
  %s277 = smov 3
  %v278 = vld [vmem:[%s276] ss:$16 sm:%s277]
  %s279 = scalar_lea.vmem %s0, 10
  %s280 = smov 12
  %v281 = vld [vmem:[%s279] ss:$16 sm:%s280]
  %vm282 = vcmask 1043458
  %v283 = vsel %vm282, %v281, %v278
  %s284 = scalar_lea.vmem %s0, 10
  %s285 = smov 48
  %v286 = vld [vmem:[%s284] ss:$16 sm:%s285]
  %vm287 = vcmask 1045508
  %v288 = vsel %vm287, %v286, %v283
  %s289 = scalar_lea.vmem %s0, 10
  %s290 = smov 192
  %v291 = vld [vmem:[%s289] ss:$16 sm:%s290]
  %vm292 = vcmask 1047558
  %v293 = vsel %vm292, %v291, %v288
  %294 = vrot.lane.b32.xlu0 %v293, 32
  %v295 = vpop.permute.xlu0 %294
  %vm296 = vcmask 392448
  %s297 = scalar_lea.vmem %s1, 8
  %298 = vst.msk [vmem:[%s297] sm:$0xff] %vm296, %v295
  %s299 = scalar_lea.vmem %s0, 1
  %s300 = smov 3
  %v301 = vld [vmem:[%s299] ss:$16 sm:%s300]
  %s302 = scalar_lea.vmem %s0, 1
  %s303 = smov 12
  %v304 = vld [vmem:[%s302] ss:$16 sm:%s303]
  %vm305 = vcmask 1043458
  %v306 = vsel %vm305, %v304, %v301
  %s307 = scalar_lea.vmem %s0, 1
  %s308 = smov 48
  %v309 = vld [vmem:[%s307] ss:$16 sm:%s308]
  %vm310 = vcmask 1045508
  %v311 = vsel %vm310, %v309, %v306
  %s312 = scalar_lea.vmem %s0, 1
  %s313 = smov 192
  %v314 = vld [vmem:[%s312] ss:$16 sm:%s313]
  %vm315 = vcmask 1047558
  %v316 = vsel %vm315, %v314, %v311
  %317 = vrot.lane.b32.xlu0 %v316, 16
  %v318 = vpop.permute.xlu0 %317
  %vm319 = vcmask 261248
  %320 = vst.msk [vmem:[%s1] sm:$0xff] %vm319, %v318
  %s321 = scalar_lea.vmem %s0, 9
  %s322 = smov 3
  %v323 = vld [vmem:[%s321] ss:$16 sm:%s322]
  %s324 = scalar_lea.vmem %s0, 9
  %s325 = smov 12
  %v326 = vld [vmem:[%s324] ss:$16 sm:%s325]
  %vm327 = vcmask 1043458
  %v328 = vsel %vm327, %v326, %v323
  %s329 = scalar_lea.vmem %s0, 9
  %s330 = smov 48
  %v331 = vld [vmem:[%s329] ss:$16 sm:%s330]
  %vm332 = vcmask 1045508
  %v333 = vsel %vm332, %v331, %v328
  %s334 = scalar_lea.vmem %s0, 9
  %s335 = smov 192
  %v336 = vld [vmem:[%s334] ss:$16 sm:%s335]
  %vm337 = vcmask 1047558
  %v338 = vsel %vm337, %v336, %v333
  %339 = vrot.lane.b32.xlu0 %v338, 16
  %v340 = vpop.permute.xlu0 %339
  %vm341 = vcmask 261248
  %s342 = scalar_lea.vmem %s1, 8
  %343 = vst.msk [vmem:[%s342] sm:$0xff] %vm341, %v340

// kernel: axial_self_attention_block.1
$region0: #{axial_self_attention_block.1}
  #allocation0 [shape = 'u32[]', space=smem, size = 0x4, offset = 0x4, fixed_abs, tag = 'smem constant byte address 0x4 - core index']
  #allocation1 [shape = 'u32[72,128]{1,0:T(1,128)}', space=vmem, size = 0x9000, scoped, tag = 'internal scratch']
  %s0 = inlined_call_operand.vmem [shape: f32[2,8,256], index: 0, kind: input, shape index: {}]
  %s1 = inlined_call_operand.vmem [shape: f32[8,256], index: 1, kind: input, shape index: {}]
  %s2 = inlined_call_operand.vmem [shape: f32[48,8], index: 2, kind: input, shape index: {}]
  %s3 = inlined_call_operand.vmem [shape: f32[8,9], index: 3, kind: input, shape index: {}]
  %s4 = inlined_call_operand.vmem [shape: f32[128,128], index: 4, kind: input, shape index: {}]
  %s5 = inlined_call_operand.vmem [shape: f32[2,8,256], index: 5, kind: output, shape index: {}]
  %s6 = sld [smem:[#allocation0]]
  $region53: #{axial_self_attention_block.1} parent=0
    _
  %s8 = ssub.s32 1, %s6
  %s9 = scalar_select 0, %s8, %s6
  loop: start=0, step=1, limit=4
  $region2: #{axial_self_attention_block.1} parent=0 // loop_pre_header
    _
  $region3: #{axial_self_attention_block.1} parent=0 // loop_header
    %s11 = sphi 0, %s15
    %p12 = scmp.ge.s32.totalorder %s11, 4
    %s21 = sphi 0, %s23
    %s24 = sphi 0, %s21
    %s25 = sphi 0, %s24
    %s41 = sphi 0, %s25
    %s45 = sphi 0, %s45
    %s47 = sphi 0, %s45
    %s48 = sphi 0, %s47
    %s62 = sphi 0, %s48
    %s66 = sphi 0, %s66
    %s68 = sphi 0, %s66
    %s69 = sphi 0, %s68
    %s83 = sphi 0, %s69
    %s87 = sphi 0, %s87
    %s89 = sphi 0, %s87
    %s90 = sphi 0, %s89
    %s104 = sphi 0, %s90
    %s108 = sphi 0, %s108
    %s110 = sphi 0, %s108
    %s111 = sphi 0, %s110
    %s125 = sphi 0, %s111
    %s131 = sphi 0, %s133
    %s134 = sphi 0, %s131
    %s135 = sphi 0, %s134
    %s151 = sphi 0, %s135
  $region4: #{axial_self_attention_block.1} parent=0 // loop_header_branch
    %14 = sbr.rel (%p12) target = $region8
  $region5: #{axial_self_attention_block.1} parent=0 // loop_body
    %s16 = ssub.s32 %s11, 1
    %s17 = ssub.s32 %s11, 2
    %s18 = sadd.s32 %s11, 1
    %s19 = ssub.s32 %s11, %s18
    %p20 = scmp.eq.s32.totalorder %s19, 0
    %s22 = sadd.s32 %s21, 1
    %s23 = scalar_select %p20, %s21, %s22
    %p26 = pneg %p20
    %p27 = scmp.eq.s32.totalorder %s11, 1
    %p28 = por %p26, %p27
    %p29 = scmp.ne.s32.totalorder %s21, %s24
    %p30 = scmp.eq.s32.totalorder %s11, 0
    %p31 = por %p29, %p30
    %p32 = scmp.ne.s32.totalorder %s21, %s24
    %p33 = scmp.eq.s32.totalorder %s16, 1
    %p34 = por %p32, %p33
    %p35 = scmp.ne.s32.totalorder %s24, %s25
    %p36 = scmp.eq.s32.totalorder %s16, 0
    %p37 = por %p35, %p36
    %p38 = scmp.ne.s32.totalorder %s24, %s25
    %p39 = scmp.eq.s32.totalorder %s17, 1
    %p40 = por %p38, %p39
    %p42 = scmp.ne.s32.totalorder %s25, %s41
    %p43 = scmp.eq.s32.totalorder %s17, 0
    %p44 = por %p42, %p43
    %s46 = sadd.s32 %s45, 1
    %p49 = scmp.eq.s32.totalorder %s11, 1
    %p50 = scmp.ne.s32.totalorder %s45, %s47
    %p51 = scmp.eq.s32.totalorder %s11, 0
    %p52 = por %p50, %p51
    %p53 = scmp.ne.s32.totalorder %s45, %s47
    %p54 = scmp.eq.s32.totalorder %s16, 1
    %p55 = por %p53, %p54
    %p56 = scmp.ne.s32.totalorder %s47, %s48
    %p57 = scmp.eq.s32.totalorder %s16, 0
    %p58 = por %p56, %p57
    %p59 = scmp.ne.s32.totalorder %s47, %s48
    %p60 = scmp.eq.s32.totalorder %s17, 1
    %p61 = por %p59, %p60
    %p63 = scmp.ne.s32.totalorder %s48, %s62
    %p64 = scmp.eq.s32.totalorder %s17, 0
    %p65 = por %p63, %p64
    %s67 = sadd.s32 %s66, 1
    %p70 = scmp.eq.s32.totalorder %s11, 1
    %p71 = scmp.ne.s32.totalorder %s66, %s68
    %p72 = scmp.eq.s32.totalorder %s11, 0
    %p73 = por %p71, %p72
    %p74 = scmp.ne.s32.totalorder %s66, %s68
    %p75 = scmp.eq.s32.totalorder %s16, 1
    %p76 = por %p74, %p75
    %p77 = scmp.ne.s32.totalorder %s68, %s69
    %p78 = scmp.eq.s32.totalorder %s16, 0
    %p79 = por %p77, %p78
    %p80 = scmp.ne.s32.totalorder %s68, %s69
    %p81 = scmp.eq.s32.totalorder %s17, 1
    %p82 = por %p80, %p81
    %p84 = scmp.ne.s32.totalorder %s69, %s83
    %p85 = scmp.eq.s32.totalorder %s17, 0
    %p86 = por %p84, %p85
    %s88 = sadd.s32 %s87, 1
    %p91 = scmp.eq.s32.totalorder %s11, 1
    %p92 = scmp.ne.s32.totalorder %s87, %s89
    %p93 = scmp.eq.s32.totalorder %s11, 0
    %p94 = por %p92, %p93
    %p95 = scmp.ne.s32.totalorder %s87, %s89
    %p96 = scmp.eq.s32.totalorder %s16, 1
    %p97 = por %p95, %p96
    %p98 = scmp.ne.s32.totalorder %s89, %s90
    %p99 = scmp.eq.s32.totalorder %s16, 0
    %p100 = por %p98, %p99
    %p101 = scmp.ne.s32.totalorder %s89, %s90
    %p102 = scmp.eq.s32.totalorder %s17, 1
    %p103 = por %p101, %p102
    %p105 = scmp.ne.s32.totalorder %s90, %s104
    %p106 = scmp.eq.s32.totalorder %s17, 0
    %p107 = por %p105, %p106
    %s109 = sadd.s32 %s108, 1
    %p112 = scmp.eq.s32.totalorder %s11, 1
    %p113 = scmp.ne.s32.totalorder %s108, %s110
    %p114 = scmp.eq.s32.totalorder %s11, 0
    %p115 = por %p113, %p114
    %p116 = scmp.ne.s32.totalorder %s108, %s110
    %p117 = scmp.eq.s32.totalorder %s16, 1
    %p118 = por %p116, %p117
    %p119 = scmp.ne.s32.totalorder %s110, %s111
    %p120 = scmp.eq.s32.totalorder %s16, 0
    %p121 = por %p119, %p120
    %p122 = scmp.ne.s32.totalorder %s110, %s111
    %p123 = scmp.eq.s32.totalorder %s17, 1
    %p124 = por %p122, %p123
    %p126 = scmp.ne.s32.totalorder %s111, %s125
    %p127 = scmp.eq.s32.totalorder %s17, 0
    %p128 = por %p126, %p127
    %s129 = ssub.s32 %s11, %s18
    %p130 = scmp.eq.s32.totalorder %s129, 0
    %s132 = sadd.s32 %s131, 1
    %s133 = scalar_select %p130, %s131, %s132
    %p136 = pneg %p130
    %p137 = scmp.eq.s32.totalorder %s11, 1
    %p138 = por %p136, %p137
    %p139 = scmp.ne.s32.totalorder %s131, %s134
    %p140 = scmp.eq.s32.totalorder %s11, 0
    %p141 = por %p139, %p140
    %p142 = scmp.ne.s32.totalorder %s131, %s134
    %p143 = scmp.eq.s32.totalorder %s16, 1
    %p144 = por %p142, %p143
    %p145 = scmp.ne.s32.totalorder %s134, %s135
    %p146 = scmp.eq.s32.totalorder %s16, 0
    %p147 = por %p145, %p146
    %p148 = scmp.ne.s32.totalorder %s134, %s135
    %p149 = scmp.eq.s32.totalorder %s17, 1
    %p150 = por %p148, %p149
    %p152 = scmp.ne.s32.totalorder %s135, %s151
    %p153 = scmp.eq.s32.totalorder %s17, 0
    %p154 = por %p152, %p153
    %p155 = scmp.le.s32.totalorder 1, %s11
    %p156 = scmp.lt.s32.totalorder %s11, 3
    %p157 = pnand %p155, %p156
    %p158 = pneg %p157
    // Predicated region
    $region9: #{axial_self_attention_block.1} parent=5 // pred_check
      _
    $region10: #{axial_self_attention_block.1} parent=5 // pred_check_branch
      %160 = sbr.rel (%p157) target = $region12
    $region11: #{axial_self_attention_block.1} parent=5 // pred_region
      %s161 = ssub.s32 %s11, 1
      // Predicated region
      $region13: #{axial_self_attention_block.1} parent=11 // pred_check
        %p162 = pneg %p58
      $region14: #{axial_self_attention_block.1} parent=11 // pred_check_branch
        %164 = sbr.rel (%p162) target = $region16
      $region15: #{axial_self_attention_block.1} parent=11 // pred_region
        _
      $region16: #{axial_self_attention_block.1} parent=11 // pred_fallthru
        _
      // Predicated region
      $region17: #{axial_self_attention_block.1} parent=11 // pred_check
        %p165 = pneg %p79
      $region18: #{axial_self_attention_block.1} parent=11 // pred_check_branch
        %167 = sbr.rel (%p165) target = $region20
      $region19: #{axial_self_attention_block.1} parent=11 // pred_region
        _
      $region20: #{axial_self_attention_block.1} parent=11 // pred_fallthru
        _
      // Predicated region
      $region21: #{axial_self_attention_block.1} parent=11 // pred_check
        %p168 = pneg %p100
      $region22: #{axial_self_attention_block.1} parent=11 // pred_check_branch
        %170 = sbr.rel (%p168) target = $region24
      $region23: #{axial_self_attention_block.1} parent=11 // pred_region
        _
      $region24: #{axial_self_attention_block.1} parent=11 // pred_fallthru
        _
      // Predicated region
      $region25: #{axial_self_attention_block.1} parent=11 // pred_check
        %p171 = pneg %p121
      $region26: #{axial_self_attention_block.1} parent=11 // pred_check_branch
        %173 = sbr.rel (%p171) target = $region28
      $region27: #{axial_self_attention_block.1} parent=11 // pred_region
        _
      $region28: #{axial_self_attention_block.1} parent=11 // pred_fallthru
        _
    $region12: #{axial_self_attention_block.1} parent=5 // pred_fallthru
      _
    %p174 = scmp.lt.s32.totalorder %s11, 2
    // Predicated region
    $region29: #{axial_self_attention_block.1} parent=5 // pred_check
      %p175 = pneg %p174
    $region30: #{axial_self_attention_block.1} parent=5 // pred_check_branch
      %177 = sbr.rel (%p175) target = $region32
    $region31: #{axial_self_attention_block.1} parent=5 // pred_region
      // Predicated region
      $region33: #{axial_self_attention_block.1} parent=31 // pred_check
        %p178 = pneg %p31
      $region34: #{axial_self_attention_block.1} parent=31 // pred_check_branch
        %180 = sbr.rel (%p178) target = $region36
      $region35: #{axial_self_attention_block.1} parent=31 // pred_region
        %p181 = scmp.lt.s32.totalorder %s11, 1
        %s182 = scalar_select %p181, %s11, 1
        %s183 = smul.addr %s182, 2
        %s184 = smul.addr %s183, 8
        %s185 = scalar_lea.vmem %s0, %s184
      $region36: #{axial_self_attention_block.1} parent=31 // pred_fallthru
        _
    $region32: #{axial_self_attention_block.1} parent=5 // pred_fallthru
      _
    %p186 = scmp.le.s32.totalorder 1, %s11
    %p187 = scmp.lt.s32.totalorder %s11, 3
    %p188 = pnand %p186, %p187
    %p189 = pneg %p188
    // Predicated region
    $region37: #{axial_self_attention_block.1} parent=5 // pred_check
      _
    $region38: #{axial_self_attention_block.1} parent=5 // pred_check_branch
      %191 = sbr.rel (%p188) target = $region40
    $region39: #{axial_self_attention_block.1} parent=5 // pred_region
      %s192 = ssub.s32 %s11, 1
      %p193 = scmp.lt.s32.totalorder %s16, 1
      %s194 = scalar_select %p193, %s16, 1
      %s195 = smul.addr %s194, 2
      %s196 = smul.addr %s195, 8
      %s197 = scalar_lea.vmem %s0, %s196
      %p198 = pneg %p37
      %p199 = pneg %p34
      %p200 = pneg %p58
      %p201 = pneg %p55
      %p202 = pneg %p79
      %p203 = pneg %p76
      %p204 = pneg %p100
      %p205 = pneg %p97
      %p206 = pneg %p121
      %p207 = pneg %p118
      %p208 = pneg %p147
      %p209 = pneg %p144
      %p210 = scmp.lt.s32.totalorder %s16, 1
      %s211 = scalar_select %p210, %s16, 1
      %s212 = smul.addr %s211, 2
      %s213 = smul.addr %s212, 8
      %s214 = scalar_lea.vmem %s5, %s213
      %p215 = scmp.lt.s32.totalorder %s16, 1
      %s216 = scalar_select %p215, %s16, 1
      %s217 = smul.addr %s216, 2
      %s218 = smul.addr %s217, 8
      %s219 = scalar_lea.vmem %s0, %s218
      %p220 = scmp.lt.s32.totalorder %s16, 1
      %s221 = scalar_select %p220, %s16, 1
      %s222 = smul.addr %s221, 2
      %s223 = smul.addr %s222, 8
      %s224 = scalar_lea.vmem %s5, %s223
      %v226 = vld [vmem:[%s219] sm:$0xff]
      %v227 = vld [vmem:[%s219 + $0x8] sm:$0xff]
      %v228 = vld [vmem:[%s2] sm:$0xff]
      %v229 = vld [vmem:[%s2 + $0x8] sm:$0xff]
      %v230 = vld [vmem:[%s2 + $0x10] sm:$0xff]
      %v231 = vld [vmem:[%s2 + $0x18] sm:$0xff]
      %v232 = vld [vmem:[%s2 + $0x20] sm:$0xff]
      %v233 = vld [vmem:[%s2 + $0x28] sm:$0xff]
      %v234 = vld [vmem:[%s3] sm:$0xff]
      %v235 = vld [vmem:[%s4] sm:$0xff]
      %v236 = vld [vmem:[%s4 + $0x8] sm:$0xff]
      %v237 = vld [vmem:[%s4 + $0x10] sm:$0xff]
      %v238 = vld [vmem:[%s4 + $0x18] sm:$0xff]
      %v239 = vld [vmem:[%s4 + $0x20] sm:$0xff]
      %v240 = vld [vmem:[%s4 + $0x28] sm:$0xff]
      %v241 = vld [vmem:[%s4 + $0x30] sm:$0xff]
      %v242 = vld [vmem:[%s4 + $0x38] sm:$0xff]
      %v243 = vld [vmem:[%s4 + $0x40] sm:$0xff]
      %v244 = vld [vmem:[%s4 + $0x48] sm:$0xff]
      %v245 = vld [vmem:[%s4 + $0x50] sm:$0xff]
      %v246 = vld [vmem:[%s4 + $0x58] sm:$0xff]
      %v247 = vld [vmem:[%s4 + $0x60] sm:$0xff]
      %v248 = vld [vmem:[%s4 + $0x68] sm:$0xff]
      %v249 = vld [vmem:[%s4 + $0x70] sm:$0xff]
      %v250 = vld [vmem:[%s4 + $0x78] sm:$0xff]
      %v251 = vld [vmem:[%s1] sm:$0xff]
      %v252 = vld [vmem:[%s1 + $0x8] sm:$0xff]
      %v253 = vadd.f32 %v226, %v251
      %v254 = vadd.f32 %v227, %v252
      %v255 = vadd.f32 %v253, %v254
      %256 = vadd.xlane.f32.xlu0 %v255
      %v257 = vpop.xlane.xlu0 %256
      %vm258 = vcmask 64512
      %v260 = vsel %vm258, %v233, 0
      %262 = vmatpush.msra.mxu0 0.0
      %263 = vmatpush.msra.mxu0 0.0
      %264 = vmatpush.msra.mxu0 0.0
      %265 = vmatpush.msra.mxu0 0.0
      %266 = vmatpush.msra.mxu0 0.0
      %267 = vmatpush.msra.mxu0 0.0
      %268 = vmatpush.msra.mxu0 0.0
      %269 = vmatpush.msra.mxu0 0.0
      %270 = vmatpush.msra.mxu0 0.0
      %271 = vmatpush.msra.mxu0 0.0
      %272 = vmatpush.msra.mxu0 0.0
      %273 = vmatpush.msra.mxu0 0.0
      %274 = vmatpush.msra.mxu0 0.0
      %275 = vmatpush.msra.mxu0 0.0
      %276 = vmatpush.msra.mxu0 0.0
      %277 = vmatpush.msra.mxu0 %v257
      %278 = vmatmul.f32.gmra.mxu0 %v260
      %v279 = vpop.f32.mrf.mxu0
      %v280 = vadd.f32 0.0, %v279
      %281 = vdwg.mxu0
      %283 = vset.pattern.permute.xlu0 0
      %284 = vperm.xlu0 %283, %v280
      %v285 = vpop.permute.xlu0 %284
      %v287 = vsub.f32 %v253, %v285
      %v288 = vsub.f32 %v254, %v285
      %v289 = vmul.f32 %v287, %v287
      %v290 = vmul.f32 %v288, %v288
      %v291 = vadd.f32 %v289, %v290
      %292 = vadd.xlane.f32.xlu0 %v291
      %v293 = vpop.xlane.xlu0 %292
      %294 = vmatpush.msra.mxu0 0.0
      %295 = vmatpush.msra.mxu0 0.0
      %296 = vmatpush.msra.mxu0 0.0
      %297 = vmatpush.msra.mxu0 0.0
      %298 = vmatpush.msra.mxu0 0.0
      %299 = vmatpush.msra.mxu0 0.0
      %300 = vmatpush.msra.mxu0 0.0
      %301 = vmatpush.msra.mxu0 0.0
      %302 = vmatpush.msra.mxu0 0.0
      %303 = vmatpush.msra.mxu0 0.0
      %304 = vmatpush.msra.mxu0 0.0
      %305 = vmatpush.msra.mxu0 0.0
      %306 = vmatpush.msra.mxu0 0.0
      %307 = vmatpush.msra.mxu0 0.0
      %308 = vmatpush.msra.mxu0 0.0
      %309 = vmatpush.msra.mxu0 %v293
      %310 = vmatmul.f32.gmra.mxu0 %v260
      %v311 = vpop.f32.mrf.mxu0
      %v312 = vadd.f32 1e-05, %v311
      %313 = vdwg.mxu0
      %v314 = vrsqrt.pop %v312
      %v315 = vmul.f32 %v314, %v312
      %v316 = vmul.f32 %v315, %v314
      %v317 = vmul.f32 0.5, %v316
      %v318 = vsub.f32 1.5, %v317
      %v319 = vmul.f32 %v314, %v318
      %vm320 = vweird.f32 %v312
      %vm321 = vweird.f32 %v314
      %vm322 = vmor %vm320, %vm321
      %v323 = vsel %vm322, %v314, %v319
      %v324 = vmul.f32 %v323, %v234
      %326 = vset.pattern.permute.xlu0 0
      %327 = vperm.xlu0 %326, %v324
      %v328 = vpop.permute.xlu0 %327
      %v330 = vmul.f32 %v287, %v328
      %v331 = vmul.f32 %v288, %v328
      %333 = vset.pattern.permute.xlu0 1
      %334 = vperm.xlu0 %333, %v234
      %v335 = vpop.permute.xlu0 %334
      %v337 = vadd.f32 %v330, %v335
      %v338 = vadd.f32 %v331, %v335
      %v340 = vsel %vm258, %v228, 0
      %v343 = vsel %vm258, %v229, 0
      %v346 = vsel %vm258, %v230, 0
      %348 = vmatpush.msra.mxu0 0.0
      %349 = vmatpush.msra.mxu0 0.0
      %350 = vmatpush.msra.mxu0 0.0
      %351 = vmatpush.msra.mxu0 0.0
      %352 = vmatpush.msra.mxu0 0.0
      %353 = vmatpush.msra.mxu0 0.0
      %354 = vmatpush.msra.mxu0 0.0
      %355 = vmatpush.msra.mxu0 0.0
      %356 = vmatpush.msra.mxu0 0.0
      %357 = vmatpush.msra.mxu0 0.0
      %358 = vmatpush.msra.mxu0 0.0
      %359 = vmatpush.msra.mxu0 0.0
      %360 = vmatpush.msra.mxu0 0.0
      %361 = vmatpush.msra.mxu0 0.0
      %362 = vmatpush.msra.mxu0 0.0
      %363 = vmatpush.msra.mxu0 %v337
      %364 = vmatmul.f32.gmra.mxu0 %v340
      %v365 = vpop.f32.mrf.mxu0
      %v366 = vadd.f32 0.0, %v365
      %367 = vmatmul.f32.gmra.mxu0 %v343
      %v368 = vpop.f32.mrf.mxu0
      %v369 = vadd.f32 0.0, %v368
      %370 = vmatmul.f32.gmra.mxu0 %v346
      %v371 = vpop.f32.mrf.mxu0
      %v372 = vadd.f32 0.0, %v371
      %373 = vdwg.mxu0
      %374 = vmatpush.msra.mxu0 0.0
      %375 = vmatpush.msra.mxu0 0.0
      %376 = vmatpush.msra.mxu0 0.0
      %377 = vmatpush.msra.mxu0 0.0
      %378 = vmatpush.msra.mxu0 0.0
      %379 = vmatpush.msra.mxu0 0.0
      %380 = vmatpush.msra.mxu0 0.0
      %381 = vmatpush.msra.mxu0 0.0
      %382 = vmatpush.msra.mxu0 0.0
      %383 = vmatpush.msra.mxu0 0.0
      %384 = vmatpush.msra.mxu0 0.0
      %385 = vmatpush.msra.mxu0 0.0
      %386 = vmatpush.msra.mxu0 0.0
      %387 = vmatpush.msra.mxu0 0.0
      %388 = vmatpush.msra.mxu0 0.0
      %389 = vmatpush.msra.mxu0 %v338
      %390 = vmatmul.f32.gmra.mxu0 %v340
      %v391 = vpop.f32.mrf.mxu0
      %v392 = vadd.f32 0.0, %v391
      %393 = vmatmul.f32.gmra.mxu0 %v343
      %v394 = vpop.f32.mrf.mxu0
      %v395 = vadd.f32 0.0, %v394
      %396 = vmatmul.f32.gmra.mxu0 %v346
      %v397 = vpop.f32.mrf.mxu0
      %v398 = vadd.f32 0.0, %v397
      %399 = vdwg.mxu0
      %400 = vset.pattern.permute.xlu0 4
      %401 = vperm.xlu0 %400, %v234
      %v402 = vpop.permute.xlu0 %401
      %v404 = vadd.f32 %v366, %v402
      %v405 = vadd.f32 %v392, %v402
      %v406 = vmul.f32 %v404, 0.35355338
      %v407 = vmul.f32 %v405, 0.35355338
      %v408 = vpack.c.bf16 %v407, %v406
      %409 = vset.pattern.permute.xlu0 5
      %410 = vperm.xlu0 %409, %v234
      %v411 = vpop.permute.xlu0 %410
      %v413 = vadd.f32 %v369, %v411
      %v414 = vadd.f32 %v395, %v411
      %v415 = vpack.c.bf16 %v414, %v413
      %416 = vset.pattern.permute.xlu0 6
      %417 = vperm.xlu0 %416, %v234
      %v418 = vpop.permute.xlu0 %417
      %v420 = vadd.f32 %v372, %v418
      %v421 = vadd.f32 %v398, %v418
      %v422 = vpack.c.bf16 %v421, %v420
      %423 = vxpose.xlu0.c.b16.start [1/8] %v408, 128
      %424 = vxpose.xlu0.c.b16.cont [2/8] 0, 128
      %425 = vxpose.xlu0.c.b16.cont [3/8] 0, 128
      %426 = vxpose.xlu0.c.b16.cont [4/8] 0, 128
      %427 = vxpose.xlu0.c.b16.cont [5/8] 0, 128
      %428 = vxpose.xlu0.c.b16.cont [6/8] 0, 128
      %429 = vxpose.xlu0.c.b16.cont [7/8] 0, 128
      %430 = vxpose.xlu0.c.b16.end [8/8] 0, 128
      %v431 = vpop.trf.xlu0
      %v432 = vpop.trf.xlu0
      %v433 = vpop.trf.xlu0
      %v434 = vpop.trf.xlu0
      %v435 = vpop.trf.xlu0
      %v436 = vpop.trf.xlu0
      %v437 = vpop.trf.xlu0
      %v438 = vpop.trf.xlu0
      %v440 = vsel %vm258, %v431, 0
      %v443 = vsel %vm258, %v432, 0
      %v446 = vsel %vm258, %v433, 0
      %v449 = vsel %vm258, %v434, 0
      %v452 = vsel %vm258, %v435, 0
      %v455 = vsel %vm258, %v436, 0
      %v458 = vsel %vm258, %v437, 0
      %v461 = vsel %vm258, %v438, 0
      %vm463 = vcmask 1043456
      %v465 = vsel %vm463, %v415, 0
      %467 = vmatpush.bf16.msra.mxu0 0
      %468 = vmatpush.bf16.msra.mxu0 0
      %469 = vmatpush.bf16.msra.mxu0 0
      %470 = vmatpush.bf16.msra.mxu0 0
      %471 = vmatpush.bf16.msra.mxu0 0
      %472 = vmatpush.bf16.msra.mxu0 0
      %473 = vmatpush.bf16.msra.mxu0 0
      %474 = vmatpush.bf16.msra.mxu0 %v465
      %475 = vmatmul.bf16.gmra.mxu0 %v440
      %v476 = vpop.f32.mrf.mxu0
      %v477 = vadd.f32 %v235, %v476
      %v478 = vpop.f32.mrf.mxu0
      %v479 = vadd.f32 %v236, %v478
      %480 = vmatmul.bf16.gmra.mxu0 %v443
      %v481 = vpop.f32.mrf.mxu0
      %v482 = vadd.f32 %v237, %v481
      %v483 = vpop.f32.mrf.mxu0
      %v484 = vadd.f32 %v238, %v483
      %485 = vmatmul.bf16.gmra.mxu0 %v446
      %v486 = vpop.f32.mrf.mxu0
      %v487 = vadd.f32 %v239, %v486
      %v488 = vpop.f32.mrf.mxu0
      %v489 = vadd.f32 %v240, %v488
      %490 = vmatmul.bf16.gmra.mxu0 %v449
      %v491 = vpop.f32.mrf.mxu0
      %v492 = vadd.f32 %v241, %v491
      %v493 = vpop.f32.mrf.mxu0
      %v494 = vadd.f32 %v242, %v493
      %495 = vmatmul.bf16.gmra.mxu0 %v452
      %v496 = vpop.f32.mrf.mxu0
      %v497 = vadd.f32 %v243, %v496
      %v498 = vpop.f32.mrf.mxu0
      %v499 = vadd.f32 %v244, %v498
      %500 = vmatmul.bf16.gmra.mxu0 %v455
      %v501 = vpop.f32.mrf.mxu0
      %v502 = vadd.f32 %v245, %v501
      %v503 = vpop.f32.mrf.mxu0
      %v504 = vadd.f32 %v246, %v503
      %505 = vmatmul.bf16.gmra.mxu0 %v458
      %v506 = vpop.f32.mrf.mxu0
      %v507 = vadd.f32 %v247, %v506
      %v508 = vpop.f32.mrf.mxu0
      %v509 = vadd.f32 %v248, %v508
      %510 = vmatmul.bf16.gmra.mxu0 %v461
      %v511 = vpop.f32.mrf.mxu0
      %v512 = vadd.f32 %v249, %v511
      %v513 = vpop.f32.mrf.mxu0
      %v514 = vadd.f32 %v250, %v513
      %515 = vdwg.mxu0
      %516 = vmax.xlane.f32.xlu0 %v477
      %v517 = vpop.xlane.xlu0 %516
      %518 = vmax.xlane.f32.xlu0 %v479
      %v519 = vpop.xlane.xlu0 %518
      %520 = vmax.xlane.f32.xlu0 %v482
      %v521 = vpop.xlane.xlu0 %520
      %522 = vmax.xlane.f32.xlu0 %v484
      %v523 = vpop.xlane.xlu0 %522
      %524 = vmax.xlane.f32.xlu0 %v487
      %v525 = vpop.xlane.xlu0 %524
      %526 = vmax.xlane.f32.xlu0 %v489
      %v527 = vpop.xlane.xlu0 %526
      %528 = vmax.xlane.f32.xlu0 %v492
      %v529 = vpop.xlane.xlu0 %528
      %530 = vmax.xlane.f32.xlu0 %v494
      %v531 = vpop.xlane.xlu0 %530
      %532 = vmax.xlane.f32.xlu0 %v497
      %v533 = vpop.xlane.xlu0 %532
      %534 = vmax.xlane.f32.xlu0 %v499
      %v535 = vpop.xlane.xlu0 %534
      %536 = vmax.xlane.f32.xlu0 %v502
      %v537 = vpop.xlane.xlu0 %536
      %538 = vmax.xlane.f32.xlu0 %v504
      %v539 = vpop.xlane.xlu0 %538
      %540 = vmax.xlane.f32.xlu0 %v507
      %v541 = vpop.xlane.xlu0 %540
      %542 = vmax.xlane.f32.xlu0 %v509
      %v543 = vpop.xlane.xlu0 %542
      %544 = vmax.xlane.f32.xlu0 %v512
      %v545 = vpop.xlane.xlu0 %544
      %546 = vmax.xlane.f32.xlu0 %v514
      %v547 = vpop.xlane.xlu0 %546
      %v548 = vsub.f32 %v477, %v517
      %v549 = vsub.f32 %v479, %v519
      %v550 = vsub.f32 %v482, %v521
      %v551 = vsub.f32 %v484, %v523
      %v552 = vsub.f32 %v487, %v525
      %v553 = vsub.f32 %v489, %v527
      %v554 = vsub.f32 %v492, %v529
      %v555 = vsub.f32 %v494, %v531
      %v556 = vsub.f32 %v497, %v533
      %v557 = vsub.f32 %v499, %v535
      %v558 = vsub.f32 %v502, %v537
      %v559 = vsub.f32 %v504, %v539
      %v560 = vsub.f32 %v507, %v541
      %v561 = vsub.f32 %v509, %v543
      %v562 = vsub.f32 %v512, %v545
      %v563 = vsub.f32 %v514, %v547
      %v564 = vmul.f32 %v548, 1.442695
      %v565 = vpow.pop %v564
      %v566 = vmul.f32 %v549, 1.442695
      %v567 = vpow.pop %v566
      %v568 = vmul.f32 %v550, 1.442695
      %v569 = vpow.pop %v568
      %v570 = vmul.f32 %v551, 1.442695
      %v571 = vpow.pop %v570
      %v572 = vmul.f32 %v552, 1.442695
      %v573 = vpow.pop %v572
      %v574 = vmul.f32 %v553, 1.442695
      %v575 = vpow.pop %v574
      %v576 = vmul.f32 %v554, 1.442695
      %v577 = vpow.pop %v576
      %v578 = vmul.f32 %v555, 1.442695
      %v579 = vpow.pop %v578
      %v580 = vmul.f32 %v556, 1.442695
      %v581 = vpow.pop %v580
      %v582 = vmul.f32 %v557, 1.442695
      %v583 = vpow.pop %v582
      %v584 = vmul.f32 %v558, 1.442695
      %v585 = vpow.pop %v584
      %v586 = vmul.f32 %v559, 1.442695
      %v587 = vpow.pop %v586
      %v588 = vmul.f32 %v560, 1.442695
      %v589 = vpow.pop %v588
      %v590 = vmul.f32 %v561, 1.442695
      %v591 = vpow.pop %v590
      %v592 = vmul.f32 %v562, 1.442695
      %v593 = vpow.pop %v592
      %v594 = vmul.f32 %v563, 1.442695
      %v595 = vpow.pop %v594
      %596 = vadd.xlane.f32.xlu0 %v565
      %v597 = vpop.xlane.xlu0 %596
      %598 = vadd.xlane.f32.xlu0 %v567
      %v599 = vpop.xlane.xlu0 %598
      %600 = vadd.xlane.f32.xlu0 %v569
      %v601 = vpop.xlane.xlu0 %600
      %602 = vadd.xlane.f32.xlu0 %v571
      %v603 = vpop.xlane.xlu0 %602
      %604 = vadd.xlane.f32.xlu0 %v573
      %v605 = vpop.xlane.xlu0 %604
      %606 = vadd.xlane.f32.xlu0 %v575
      %v607 = vpop.xlane.xlu0 %606
      %608 = vadd.xlane.f32.xlu0 %v577
      %v609 = vpop.xlane.xlu0 %608
      %610 = vadd.xlane.f32.xlu0 %v579
      %v611 = vpop.xlane.xlu0 %610
      %612 = vadd.xlane.f32.xlu0 %v581
      %v613 = vpop.xlane.xlu0 %612
      %614 = vadd.xlane.f32.xlu0 %v583
      %v615 = vpop.xlane.xlu0 %614
      %616 = vadd.xlane.f32.xlu0 %v585
      %v617 = vpop.xlane.xlu0 %616
      %618 = vadd.xlane.f32.xlu0 %v587
      %v619 = vpop.xlane.xlu0 %618
      %620 = vadd.xlane.f32.xlu0 %v589
      %v621 = vpop.xlane.xlu0 %620
      %622 = vadd.xlane.f32.xlu0 %v591
      %v623 = vpop.xlane.xlu0 %622
      %624 = vadd.xlane.f32.xlu0 %v593
      %v625 = vpop.xlane.xlu0 %624
      %626 = vadd.xlane.f32.xlu0 %v595
      %v627 = vpop.xlane.xlu0 %626
      %v628 = vrcp.pop %v597
      %v629 = vrcp.pop %v599
      %v630 = vrcp.pop %v601
      %v631 = vrcp.pop %v603
      %v632 = vrcp.pop %v605
      %v633 = vrcp.pop %v607
      %v634 = vrcp.pop %v609
      %v635 = vrcp.pop %v611
      %v636 = vrcp.pop %v613
      %v637 = vrcp.pop %v615
      %v638 = vrcp.pop %v617
      %v639 = vrcp.pop %v619
      %v640 = vrcp.pop %v621
      %v641 = vrcp.pop %v623
      %v642 = vrcp.pop %v625
      %v643 = vrcp.pop %v627
      %v644 = vmul.f32 %v597, %v628
      %v645 = vmul.f32 %v599, %v629
      %v646 = vmul.f32 %v601, %v630
      %v647 = vmul.f32 %v603, %v631
      %v648 = vmul.f32 %v605, %v632
      %v649 = vmul.f32 %v607, %v633
      %v650 = vmul.f32 %v609, %v634
      %v651 = vmul.f32 %v611, %v635
      %v652 = vmul.f32 %v613, %v636
      %v653 = vmul.f32 %v615, %v637
      %v654 = vmul.f32 %v617, %v638
      %v655 = vmul.f32 %v619, %v639
      %v656 = vmul.f32 %v621, %v640
      %v657 = vmul.f32 %v623, %v641
      %v658 = vmul.f32 %v625, %v642
      %v659 = vmul.f32 %v627, %v643
      %v660 = vsub.f32 2.0, %v644
      %v661 = vsub.f32 2.0, %v645
      %v662 = vsub.f32 2.0, %v646
      %v663 = vsub.f32 2.0, %v647
      %v664 = vsub.f32 2.0, %v648
      %v665 = vsub.f32 2.0, %v649
      %v666 = vsub.f32 2.0, %v650
      %v667 = vsub.f32 2.0, %v651
      %v668 = vsub.f32 2.0, %v652
      %v669 = vsub.f32 2.0, %v653
      %v670 = vsub.f32 2.0, %v654
      %v671 = vsub.f32 2.0, %v655
      %v672 = vsub.f32 2.0, %v656
      %v673 = vsub.f32 2.0, %v657
      %v674 = vsub.f32 2.0, %v658
      %v675 = vsub.f32 2.0, %v659
      %v676 = vmul.f32 %v628, %v660
      %v677 = vmul.f32 %v629, %v661
      %v678 = vmul.f32 %v630, %v662
      %v679 = vmul.f32 %v631, %v663
      %v680 = vmul.f32 %v632, %v664
      %v681 = vmul.f32 %v633, %v665
      %v682 = vmul.f32 %v634, %v666
      %v683 = vmul.f32 %v635, %v667
      %v684 = vmul.f32 %v636, %v668
      %v685 = vmul.f32 %v637, %v669
      %v686 = vmul.f32 %v638, %v670
      %v687 = vmul.f32 %v639, %v671
      %v688 = vmul.f32 %v640, %v672
      %v689 = vmul.f32 %v641, %v673
      %v690 = vmul.f32 %v642, %v674
      %v691 = vmul.f32 %v643, %v675
      %v692 = vmul.f32 %v565, %v676
      %v693 = vmul.f32 %v567, %v677
      %v694 = vmul.f32 %v569, %v678
      %v695 = vmul.f32 %v571, %v679
      %v696 = vmul.f32 %v573, %v680
      %v697 = vmul.f32 %v575, %v681
      %v698 = vmul.f32 %v577, %v682
      %v699 = vmul.f32 %v579, %v683
      %v700 = vmul.f32 %v581, %v684
      %v701 = vmul.f32 %v583, %v685
      %v702 = vmul.f32 %v585, %v686
      %v703 = vmul.f32 %v587, %v687
      %v704 = vmul.f32 %v589, %v688
      %v705 = vmul.f32 %v591, %v689
      %v706 = vmul.f32 %v593, %v690
      %v707 = vmul.f32 %v595, %v691
      %v708 = vpack.c.bf16 %v693, %v692
      %v709 = vpack.c.bf16 %v695, %v694
      %v710 = vpack.c.bf16 %v697, %v696
      %v711 = vpack.c.bf16 %v699, %v698
      %v712 = vpack.c.bf16 %v701, %v700
      %v713 = vpack.c.bf16 %v703, %v702
      %v714 = vpack.c.bf16 %v705, %v704
      %v715 = vpack.c.bf16 %v707, %v706
      %716 = vmatpush.bf16.xpose.msra.mxu0 %v715
      %717 = vmatpush.bf16.xpose.msra.mxu0 %v714
      %718 = vmatpush.bf16.xpose.msra.mxu0 %v713
      %719 = vmatpush.bf16.xpose.msra.mxu0 %v712
      %720 = vmatpush.bf16.xpose.msra.mxu0 %v711
      %721 = vmatpush.bf16.xpose.msra.mxu0 %v710
      %722 = vmatpush.bf16.xpose.msra.mxu0 %v709
      %723 = vmatpush.bf16.xpose.msra.mxu0 %v708
      %724 = vmatmul.bf16.gmra.mxu0 %v422
      %v725 = vpop.f32.mrf.mxu0
      %v726 = vadd.f32 0.0, %v725
      %v727 = vpop.f32.mrf.mxu0
      %728 = vdwg.mxu0
      %v730 = vunpack.c.h.b16 %v408
      %v731 = vpack.c.b16 %v730, %v730
      %733 = vxpose.xlu0.c.b16.start [1/8] %v731, 128
      %734 = vxpose.xlu0.c.b16.cont [2/8] 0, 128
      %735 = vxpose.xlu0.c.b16.cont [3/8] 0, 128
      %736 = vxpose.xlu0.c.b16.cont [4/8] 0, 128
      %737 = vxpose.xlu0.c.b16.cont [5/8] 0, 128
      %738 = vxpose.xlu0.c.b16.cont [6/8] 0, 128
      %739 = vxpose.xlu0.c.b16.cont [7/8] 0, 128
      %740 = vxpose.xlu0.c.b16.end [8/8] 0, 128
      %v741 = vpop.trf.xlu0
      %v742 = vpop.trf.xlu0
      %v743 = vpop.trf.xlu0
      %v744 = vpop.trf.xlu0
      %v745 = vpop.trf.xlu0
      %v746 = vpop.trf.xlu0
      %v747 = vpop.trf.xlu0
      %v748 = vpop.trf.xlu0
      %v750 = vunpack.c.h.b16 %v415
      %v751 = vpack.c.b16 %v750, %v750
      %v753 = vsel %vm258, %v741, 0
      %v756 = vsel %vm258, %v742, 0
      %v759 = vsel %vm258, %v743, 0
      %v762 = vsel %vm258, %v744, 0
      %v765 = vsel %vm258, %v745, 0
      %v768 = vsel %vm258, %v746, 0
      %v771 = vsel %vm258, %v747, 0
      %v774 = vsel %vm258, %v748, 0
      %v777 = vsel %vm463, %v751, 0
      %779 = vmatpush.bf16.msra.mxu0 0
      %780 = vmatpush.bf16.msra.mxu0 0
      %781 = vmatpush.bf16.msra.mxu0 0
      %782 = vmatpush.bf16.msra.mxu0 0
      %783 = vmatpush.bf16.msra.mxu0 0
      %784 = vmatpush.bf16.msra.mxu0 0
      %785 = vmatpush.bf16.msra.mxu0 0
      %786 = vmatpush.bf16.msra.mxu0 %v777
      %787 = vmatmul.bf16.gmra.mxu0 %v753
      %v788 = vpop.f32.mrf.mxu0
      %v789 = vadd.f32 %v235, %v788
      %v790 = vpop.f32.mrf.mxu0
      %v791 = vadd.f32 %v236, %v790
      %792 = vmatmul.bf16.gmra.mxu0 %v756
      %v793 = vpop.f32.mrf.mxu0
      %v794 = vadd.f32 %v237, %v793
      %v795 = vpop.f32.mrf.mxu0
      %v796 = vadd.f32 %v238, %v795
      %797 = vmatmul.bf16.gmra.mxu0 %v759
      %v798 = vpop.f32.mrf.mxu0
      %v799 = vadd.f32 %v239, %v798
      %v800 = vpop.f32.mrf.mxu0
      %v801 = vadd.f32 %v240, %v800
      %802 = vmatmul.bf16.gmra.mxu0 %v762
      %v803 = vpop.f32.mrf.mxu0
      %v804 = vadd.f32 %v241, %v803
      %v805 = vpop.f32.mrf.mxu0
      %v806 = vadd.f32 %v242, %v805
      %807 = vmatmul.bf16.gmra.mxu0 %v765
      %v808 = vpop.f32.mrf.mxu0
      %v809 = vadd.f32 %v243, %v808
      %v810 = vpop.f32.mrf.mxu0
      %v811 = vadd.f32 %v244, %v810
      %812 = vmatmul.bf16.gmra.mxu0 %v768
      %v813 = vpop.f32.mrf.mxu0
      %v814 = vadd.f32 %v245, %v813
      %v815 = vpop.f32.mrf.mxu0
      %v816 = vadd.f32 %v246, %v815
      %817 = vmatmul.bf16.gmra.mxu0 %v771
      %v818 = vpop.f32.mrf.mxu0
      %v819 = vadd.f32 %v247, %v818
      %v820 = vpop.f32.mrf.mxu0
      %v821 = vadd.f32 %v248, %v820
      %822 = vmatmul.bf16.gmra.mxu0 %v774
      %v823 = vpop.f32.mrf.mxu0
      %v824 = vadd.f32 %v249, %v823
      %v825 = vpop.f32.mrf.mxu0
      %v826 = vadd.f32 %v250, %v825
      %827 = vdwg.mxu0
      %828 = vmax.xlane.f32.xlu0 %v789
      %v829 = vpop.xlane.xlu0 %828
      %830 = vmax.xlane.f32.xlu0 %v791
      %v831 = vpop.xlane.xlu0 %830
      %832 = vmax.xlane.f32.xlu0 %v794
      %v833 = vpop.xlane.xlu0 %832
      %834 = vmax.xlane.f32.xlu0 %v796
      %v835 = vpop.xlane.xlu0 %834
      %836 = vmax.xlane.f32.xlu0 %v799
      %v837 = vpop.xlane.xlu0 %836
      %838 = vmax.xlane.f32.xlu0 %v801
      %v839 = vpop.xlane.xlu0 %838
      %840 = vmax.xlane.f32.xlu0 %v804
      %v841 = vpop.xlane.xlu0 %840
      %842 = vmax.xlane.f32.xlu0 %v806
      %v843 = vpop.xlane.xlu0 %842
      %844 = vmax.xlane.f32.xlu0 %v809
      %v845 = vpop.xlane.xlu0 %844
      %846 = vmax.xlane.f32.xlu0 %v811
      %v847 = vpop.xlane.xlu0 %846
      %848 = vmax.xlane.f32.xlu0 %v814
      %v849 = vpop.xlane.xlu0 %848
      %850 = vmax.xlane.f32.xlu0 %v816
      %v851 = vpop.xlane.xlu0 %850
      %852 = vmax.xlane.f32.xlu0 %v819
      %v853 = vpop.xlane.xlu0 %852
      %854 = vmax.xlane.f32.xlu0 %v821
      %v855 = vpop.xlane.xlu0 %854
      %856 = vmax.xlane.f32.xlu0 %v824
      %v857 = vpop.xlane.xlu0 %856
      %858 = vmax.xlane.f32.xlu0 %v826
      %v859 = vpop.xlane.xlu0 %858
      %v860 = vsub.f32 %v789, %v829
      %v861 = vsub.f32 %v791, %v831
      %v862 = vsub.f32 %v794, %v833
      %v863 = vsub.f32 %v796, %v835
      %v864 = vsub.f32 %v799, %v837
      %v865 = vsub.f32 %v801, %v839
      %v866 = vsub.f32 %v804, %v841
      %v867 = vsub.f32 %v806, %v843
      %v868 = vsub.f32 %v809, %v845
      %v869 = vsub.f32 %v811, %v847
      %v870 = vsub.f32 %v814, %v849
      %v871 = vsub.f32 %v816, %v851
      %v872 = vsub.f32 %v819, %v853
      %v873 = vsub.f32 %v821, %v855
      %v874 = vsub.f32 %v824, %v857
      %v875 = vsub.f32 %v826, %v859
      %v876 = vmul.f32 %v860, 1.442695
      %v877 = vpow.pop %v876
      %v878 = vmul.f32 %v861, 1.442695
      %v879 = vpow.pop %v878
      %v880 = vmul.f32 %v862, 1.442695
      %v881 = vpow.pop %v880
      %v882 = vmul.f32 %v863, 1.442695
      %v883 = vpow.pop %v882
      %v884 = vmul.f32 %v864, 1.442695
      %v885 = vpow.pop %v884
      %v886 = vmul.f32 %v865, 1.442695
      %v887 = vpow.pop %v886
      %v888 = vmul.f32 %v866, 1.442695
      %v889 = vpow.pop %v888
      %v890 = vmul.f32 %v867, 1.442695
      %v891 = vpow.pop %v890
      %v892 = vmul.f32 %v868, 1.442695
      %v893 = vpow.pop %v892
      %v894 = vmul.f32 %v869, 1.442695
      %v895 = vpow.pop %v894
      %v896 = vmul.f32 %v870, 1.442695
      %v897 = vpow.pop %v896
      %v898 = vmul.f32 %v871, 1.442695
      %v899 = vpow.pop %v898
      %v900 = vmul.f32 %v872, 1.442695
      %v901 = vpow.pop %v900
      %v902 = vmul.f32 %v873, 1.442695
      %v903 = vpow.pop %v902
      %v904 = vmul.f32 %v874, 1.442695
      %v905 = vpow.pop %v904
      %v906 = vmul.f32 %v875, 1.442695
      %v907 = vpow.pop %v906
      %908 = vadd.xlane.f32.xlu0 %v877
      %v909 = vpop.xlane.xlu0 %908
      %910 = vadd.xlane.f32.xlu0 %v879
      %v911 = vpop.xlane.xlu0 %910
      %912 = vadd.xlane.f32.xlu0 %v881
      %v913 = vpop.xlane.xlu0 %912
      %914 = vadd.xlane.f32.xlu0 %v883
      %v915 = vpop.xlane.xlu0 %914
      %916 = vadd.xlane.f32.xlu0 %v885
      %v917 = vpop.xlane.xlu0 %916
      %918 = vadd.xlane.f32.xlu0 %v887
      %v919 = vpop.xlane.xlu0 %918
      %920 = vadd.xlane.f32.xlu0 %v889
      %v921 = vpop.xlane.xlu0 %920
      %922 = vadd.xlane.f32.xlu0 %v891
      %v923 = vpop.xlane.xlu0 %922
      %924 = vadd.xlane.f32.xlu0 %v893
      %v925 = vpop.xlane.xlu0 %924
      %926 = vadd.xlane.f32.xlu0 %v895
      %v927 = vpop.xlane.xlu0 %926
      %928 = vadd.xlane.f32.xlu0 %v897
      %v929 = vpop.xlane.xlu0 %928
      %930 = vadd.xlane.f32.xlu0 %v899
      %v931 = vpop.xlane.xlu0 %930
      %932 = vadd.xlane.f32.xlu0 %v901
      %v933 = vpop.xlane.xlu0 %932
      %934 = vadd.xlane.f32.xlu0 %v903
      %v935 = vpop.xlane.xlu0 %934
      %936 = vadd.xlane.f32.xlu0 %v905
      %v937 = vpop.xlane.xlu0 %936
      %938 = vadd.xlane.f32.xlu0 %v907
      %v939 = vpop.xlane.xlu0 %938
      %v940 = vrcp.pop %v909
      %v941 = vrcp.pop %v911
      %v942 = vrcp.pop %v913
      %v943 = vrcp.pop %v915
      %v944 = vrcp.pop %v917
      %v945 = vrcp.pop %v919
      %v946 = vrcp.pop %v921
      %v947 = vrcp.pop %v923
      %v948 = vrcp.pop %v925
      %v949 = vrcp.pop %v927
      %v950 = vrcp.pop %v929
      %v951 = vrcp.pop %v931
      %v952 = vrcp.pop %v933
      %v953 = vrcp.pop %v935
      %v954 = vrcp.pop %v937
      %v955 = vrcp.pop %v939
      %v956 = vmul.f32 %v909, %v940
      %v957 = vmul.f32 %v911, %v941
      %v958 = vmul.f32 %v913, %v942
      %v959 = vmul.f32 %v915, %v943
      %v960 = vmul.f32 %v917, %v944
      %v961 = vmul.f32 %v919, %v945
      %v962 = vmul.f32 %v921, %v946
      %v963 = vmul.f32 %v923, %v947
      %v964 = vmul.f32 %v925, %v948
      %v965 = vmul.f32 %v927, %v949
      %v966 = vmul.f32 %v929, %v950
      %v967 = vmul.f32 %v931, %v951
      %v968 = vmul.f32 %v933, %v952
      %v969 = vmul.f32 %v935, %v953
      %v970 = vmul.f32 %v937, %v954
      %v971 = vmul.f32 %v939, %v955
      %v972 = vsub.f32 2.0, %v956
      %v973 = vsub.f32 2.0, %v957
      %v974 = vsub.f32 2.0, %v958
      %v975 = vsub.f32 2.0, %v959
      %v976 = vsub.f32 2.0, %v960
      %v977 = vsub.f32 2.0, %v961
      %v978 = vsub.f32 2.0, %v962
      %v979 = vsub.f32 2.0, %v963
      %v980 = vsub.f32 2.0, %v964
      %v981 = vsub.f32 2.0, %v965
      %v982 = vsub.f32 2.0, %v966
      %v983 = vsub.f32 2.0, %v967
      %v984 = vsub.f32 2.0, %v968
      %v985 = vsub.f32 2.0, %v969
      %v986 = vsub.f32 2.0, %v970
      %v987 = vsub.f32 2.0, %v971
      %v988 = vmul.f32 %v940, %v972
      %v989 = vmul.f32 %v941, %v973
      %v990 = vmul.f32 %v942, %v974
      %v991 = vmul.f32 %v943, %v975
      %v992 = vmul.f32 %v944, %v976
      %v993 = vmul.f32 %v945, %v977
      %v994 = vmul.f32 %v946, %v978
      %v995 = vmul.f32 %v947, %v979
      %v996 = vmul.f32 %v948, %v980
      %v997 = vmul.f32 %v949, %v981
      %v998 = vmul.f32 %v950, %v982
      %v999 = vmul.f32 %v951, %v983
      %v1000 = vmul.f32 %v952, %v984
      %v1001 = vmul.f32 %v953, %v985
      %v1002 = vmul.f32 %v954, %v986
      %v1003 = vmul.f32 %v955, %v987
      %v1004 = vmul.f32 %v877, %v988
      %v1005 = vmul.f32 %v879, %v989
      %v1006 = vmul.f32 %v881, %v990
      %v1007 = vmul.f32 %v883, %v991
      %v1008 = vmul.f32 %v885, %v992
      %v1009 = vmul.f32 %v887, %v993
      %v1010 = vmul.f32 %v889, %v994
      %v1011 = vmul.f32 %v891, %v995
      %v1012 = vmul.f32 %v893, %v996
      %v1013 = vmul.f32 %v895, %v997
      %v1014 = vmul.f32 %v897, %v998
      %v1015 = vmul.f32 %v899, %v999
      %v1016 = vmul.f32 %v901, %v1000
      %v1017 = vmul.f32 %v903, %v1001
      %v1018 = vmul.f32 %v905, %v1002
      %v1019 = vmul.f32 %v907, %v1003
      %v1020 = vpack.c.bf16 %v1005, %v1004
      %v1021 = vpack.c.bf16 %v1007, %v1006
      %v1022 = vpack.c.bf16 %v1009, %v1008
      %v1023 = vpack.c.bf16 %v1011, %v1010
      %v1024 = vpack.c.bf16 %v1013, %v1012
      %v1025 = vpack.c.bf16 %v1015, %v1014
      %v1026 = vpack.c.bf16 %v1017, %v1016
      %v1027 = vpack.c.bf16 %v1019, %v1018
      %v1029 = vunpack.c.h.b16 %v422
      %v1030 = vpack.c.b16 %v1029, %v1029
      %1032 = vmatpush.bf16.xpose.msra.mxu0 %v1027
      %1033 = vmatpush.bf16.xpose.msra.mxu0 %v1026
      %1034 = vmatpush.bf16.xpose.msra.mxu0 %v1025
      %1035 = vmatpush.bf16.xpose.msra.mxu0 %v1024
      %1036 = vmatpush.bf16.xpose.msra.mxu0 %v1023
      %1037 = vmatpush.bf16.xpose.msra.mxu0 %v1022
      %1038 = vmatpush.bf16.xpose.msra.mxu0 %v1021
      %1039 = vmatpush.bf16.xpose.msra.mxu0 %v1020
      %1040 = vmatmul.bf16.gmra.mxu0 %v1030
      %v1041 = vpop.f32.mrf.mxu0
      %v1042 = vadd.f32 0.0, %v1041
      %v1043 = vpop.f32.mrf.mxu0
      %1044 = vdwg.mxu0
      %1045 = vset.pattern.permute.xlu0 7
      %1046 = vperm.xlu0 %1045, %v234
      %v1047 = vpop.permute.xlu0 %1046
      %v1050 = vsel %vm258, %v231, 0
      %1052 = vmatpush.msra.mxu0 0.0
      %1053 = vmatpush.msra.mxu0 0.0
      %1054 = vmatpush.msra.mxu0 0.0
      %1055 = vmatpush.msra.mxu0 0.0
      %1056 = vmatpush.msra.mxu0 0.0
      %1057 = vmatpush.msra.mxu0 0.0
      %1058 = vmatpush.msra.mxu0 0.0
      %1059 = vmatpush.msra.mxu0 0.0
      %1060 = vmatpush.msra.mxu0 0.0
      %1061 = vmatpush.msra.mxu0 0.0
      %1062 = vmatpush.msra.mxu0 0.0
      %1063 = vmatpush.msra.mxu0 0.0
      %1064 = vmatpush.msra.mxu0 0.0
      %1065 = vmatpush.msra.mxu0 0.0
      %1066 = vmatpush.msra.mxu0 0.0
      %1067 = vmatpush.msra.mxu0 %v726
      %1068 = vmatmul.f32.gmra.mxu0 %v1050
      %v1069 = vpop.f32.mrf.mxu0
      %v1070 = vadd.f32 %v1047, %v1069
      %1071 = vdwg.mxu0
      %1072 = vmatpush.msra.mxu0 0.0
      %1073 = vmatpush.msra.mxu0 0.0
      %1074 = vmatpush.msra.mxu0 0.0
      %1075 = vmatpush.msra.mxu0 0.0
      %1076 = vmatpush.msra.mxu0 0.0
      %1077 = vmatpush.msra.mxu0 0.0
      %1078 = vmatpush.msra.mxu0 0.0
      %1079 = vmatpush.msra.mxu0 0.0
      %1080 = vmatpush.msra.mxu0 0.0
      %1081 = vmatpush.msra.mxu0 0.0
      %1082 = vmatpush.msra.mxu0 0.0
      %1083 = vmatpush.msra.mxu0 0.0
      %1084 = vmatpush.msra.mxu0 0.0
      %1085 = vmatpush.msra.mxu0 0.0
      %1086 = vmatpush.msra.mxu0 0.0
      %1087 = vmatpush.msra.mxu0 %v1042
      %1088 = vmatmul.f32.gmra.mxu0 %v1050
      %v1089 = vpop.f32.mrf.mxu0
      %v1090 = vadd.f32 %v1047, %v1089
      %1091 = vdwg.mxu0
      %v1092 = vadd.f32 %v1070, %v1090
      %1093 = vadd.xlane.f32.xlu0 %v1092
      %v1094 = vpop.xlane.xlu0 %1093
      %1095 = vmatpush.msra.mxu0 0.0
      %1096 = vmatpush.msra.mxu0 0.0
      %1097 = vmatpush.msra.mxu0 0.0
      %1098 = vmatpush.msra.mxu0 0.0
      %1099 = vmatpush.msra.mxu0 0.0
      %1100 = vmatpush.msra.mxu0 0.0
      %1101 = vmatpush.msra.mxu0 0.0
      %1102 = vmatpush.msra.mxu0 0.0
      %1103 = vmatpush.msra.mxu0 0.0
      %1104 = vmatpush.msra.mxu0 0.0
      %1105 = vmatpush.msra.mxu0 0.0
      %1106 = vmatpush.msra.mxu0 0.0
      %1107 = vmatpush.msra.mxu0 0.0
      %1108 = vmatpush.msra.mxu0 0.0
      %1109 = vmatpush.msra.mxu0 0.0
      %1110 = vmatpush.msra.mxu0 %v1094
      %1111 = vmatmul.f32.gmra.mxu0 %v260
      %v1112 = vpop.f32.mrf.mxu0
      %v1113 = vadd.f32 0.0, %v1112
      %1114 = vdwg.mxu0
      %1116 = vset.pattern.permute.xlu0 0
      %1117 = vperm.xlu0 %1116, %v1113
      %v1118 = vpop.permute.xlu0 %1117
      %v1120 = vsub.f32 %v1070, %v1118
      %v1121 = vsub.f32 %v1090, %v1118
      %v1122 = vmul.f32 %v1120, %v1120
      %v1123 = vmul.f32 %v1121, %v1121
      %v1124 = vadd.f32 %v1122, %v1123
      %1125 = vadd.xlane.f32.xlu0 %v1124
      %v1126 = vpop.xlane.xlu0 %1125
      %1127 = vmatpush.msra.mxu0 0.0
      %1128 = vmatpush.msra.mxu0 0.0
      %1129 = vmatpush.msra.mxu0 0.0
      %1130 = vmatpush.msra.mxu0 0.0
      %1131 = vmatpush.msra.mxu0 0.0
      %1132 = vmatpush.msra.mxu0 0.0
      %1133 = vmatpush.msra.mxu0 0.0
      %1134 = vmatpush.msra.mxu0 0.0
      %1135 = vmatpush.msra.mxu0 0.0
      %1136 = vmatpush.msra.mxu0 0.0
      %1137 = vmatpush.msra.mxu0 0.0
      %1138 = vmatpush.msra.mxu0 0.0
      %1139 = vmatpush.msra.mxu0 0.0
      %1140 = vmatpush.msra.mxu0 0.0
      %1141 = vmatpush.msra.mxu0 0.0
      %1142 = vmatpush.msra.mxu0 %v1126
      %1143 = vmatmul.f32.gmra.mxu0 %v260
      %v1144 = vpop.f32.mrf.mxu0
      %v1145 = vadd.f32 1e-05, %v1144
      %1146 = vdwg.mxu0
      %v1147 = vrsqrt.pop %v1145
      %v1148 = vmul.f32 %v1147, %v1145
      %v1149 = vmul.f32 %v1148, %v1147
      %v1150 = vmul.f32 0.5, %v1149
      %v1151 = vsub.f32 1.5, %v1150
      %v1152 = vmul.f32 %v1147, %v1151
      %vm1153 = vweird.f32 %v1145
      %vm1154 = vweird.f32 %v1147
      %vm1155 = vmor %vm1153, %vm1154
      %v1156 = vsel %vm1155, %v1147, %v1152
      %1157 = vrot.lane.b32.xlu0 %v234, 126
      %v1158 = vpop.permute.xlu0 %1157
      %v1160 = vmul.f32 %v1156, %v1158
      %1162 = vset.pattern.permute.xlu0 0
      %1163 = vperm.xlu0 %1162, %v1160
      %v1164 = vpop.permute.xlu0 %1163
      %v1166 = vmul.f32 %v1120, %v1164
      %v1167 = vmul.f32 %v1121, %v1164
      %1168 = vset.pattern.permute.xlu0 3
      %1169 = vperm.xlu0 %1168, %v234
      %v1170 = vpop.permute.xlu0 %1169
      %v1172 = vadd.f32 %v1166, %v1170
      %v1173 = vadd.f32 %v1167, %v1170
      %1174 = vset.pattern.permute.xlu0 8
      %1175 = vperm.xlu0 %1174, %v234
      %v1176 = vpop.permute.xlu0 %1175
      %v1179 = vsel %vm258, %v232, 0
      %1181 = vmatpush.msra.mxu0 0.0
      %1182 = vmatpush.msra.mxu0 0.0
      %1183 = vmatpush.msra.mxu0 0.0
      %1184 = vmatpush.msra.mxu0 0.0
      %1185 = vmatpush.msra.mxu0 0.0
      %1186 = vmatpush.msra.mxu0 0.0
      %1187 = vmatpush.msra.mxu0 0.0
      %1188 = vmatpush.msra.mxu0 0.0
      %1189 = vmatpush.msra.mxu0 0.0
      %1190 = vmatpush.msra.mxu0 0.0
      %1191 = vmatpush.msra.mxu0 0.0
      %1192 = vmatpush.msra.mxu0 0.0
      %1193 = vmatpush.msra.mxu0 0.0
      %1194 = vmatpush.msra.mxu0 0.0
      %1195 = vmatpush.msra.mxu0 0.0
      %1196 = vmatpush.msra.mxu0 %v1172
      %1197 = vmatmul.f32.gmra.mxu0 %v1179
      %v1198 = vpop.f32.mrf.mxu0
      %v1199 = vadd.f32 %v1176, %v1198
      %1200 = vdwg.mxu0
      %1201 = vmatpush.msra.mxu0 0.0
      %1202 = vmatpush.msra.mxu0 0.0
      %1203 = vmatpush.msra.mxu0 0.0
      %1204 = vmatpush.msra.mxu0 0.0
      %1205 = vmatpush.msra.mxu0 0.0
      %1206 = vmatpush.msra.mxu0 0.0
      %1207 = vmatpush.msra.mxu0 0.0
      %1208 = vmatpush.msra.mxu0 0.0
      %1209 = vmatpush.msra.mxu0 0.0
      %1210 = vmatpush.msra.mxu0 0.0
      %1211 = vmatpush.msra.mxu0 0.0
      %1212 = vmatpush.msra.mxu0 0.0
      %1213 = vmatpush.msra.mxu0 0.0
      %1214 = vmatpush.msra.mxu0 0.0
      %1215 = vmatpush.msra.mxu0 0.0
      %1216 = vmatpush.msra.mxu0 %v1173
      %1217 = vmatmul.f32.gmra.mxu0 %v1179
      %v1218 = vpop.f32.mrf.mxu0
      %v1219 = vadd.f32 %v1176, %v1218
      %1220 = vdwg.mxu0
      %v1221 = vadd.f32 %v1199, %v226
      %v1222 = vadd.f32 %v1219, %v227
      %v1223 = vmul.f32 %v1221, 0.70710677
      %v1224 = vmul.f32 %v1222, 0.70710677
      %1225 = vst [vmem:[%s224] sm:$0xff] %v1223
      %1226 = vst [vmem:[%s224 + $0x8] sm:$0xff] %v1224
      %p1227 = scmp.lt.s32.totalorder %s16, 1
      %s1228 = scalar_select %p1227, %s16, 1
      %s1229 = smul.addr %s1228, 2
      %s1230 = smul.addr %s1229, 8
      %s1231 = scalar_lea.vmem %s5, %s1230
      // Predicated region
      $region41: #{axial_self_attention_block.1} parent=39 // pred_check
        %p1232 = pneg %p144
      $region42: #{axial_self_attention_block.1} parent=39 // pred_check_branch
        %1234 = sbr.rel (%p1232) target = $region44
      $region43: #{axial_self_attention_block.1} parent=39 // pred_region
        _
      $region44: #{axial_self_attention_block.1} parent=39 // pred_fallthru
        _
    $region40: #{axial_self_attention_block.1} parent=5 // pred_fallthru
      _
    %p1235 = scmp.le.s32.totalorder 2, %s11
    // Predicated region
    $region45: #{axial_self_attention_block.1} parent=5 // pred_check
      %p1236 = pneg %p1235
    $region46: #{axial_self_attention_block.1} parent=5 // pred_check_branch
      %1238 = sbr.rel (%p1236) target = $region48
    $region47: #{axial_self_attention_block.1} parent=5 // pred_region
      %s1239 = ssub.s32 %s11, 2
      // Predicated region
      $region49: #{axial_self_attention_block.1} parent=47 // pred_check
        %p1240 = pneg %p150
      $region50: #{axial_self_attention_block.1} parent=47 // pred_check_branch
        %1242 = sbr.rel (%p1240) target = $region52
      $region51: #{axial_self_attention_block.1} parent=47 // pred_region
        %p1243 = scmp.lt.s32.totalorder %s17, 1
        %s1244 = scalar_select %p1243, %s17, 1
        %s1245 = smul.addr %s1244, 2
        %s1246 = smul.addr %s1245, 8
        %s1247 = scalar_lea.vmem %s5, %s1246
      $region52: #{axial_self_attention_block.1} parent=47 // pred_fallthru
        _
    $region48: #{axial_self_attention_block.1} parent=5 // pred_fallthru
      _
  $region6: #{axial_self_attention_block.1} parent=0 // loop_footer
    %s15 = sadd.s32 1, %s11
  $region7: #{axial_self_attention_block.1} parent=0 // loop_footer_branch
    %10 = sbr.rel target = $region3
  $region8: #{axial_self_attention_block.1} parent=0 // loop_exit
    _

</llo_original>
